<compile_context>
chip_gen: v7x
topology: tpu7x:2x2x1
jax: 0.10.0
libtpu: 0.0.40
codegen_flags: <defaults>
</compile_context>

<pallas_src>
import functools

import jax
import jax.numpy as jnp
from jax.experimental import pallas as pl
from jax.experimental.pallas import tpu as pltpu


# ----------------------------------------------------------------------------
# Fused Pallas kernel: 3x3 conv + ReLU -> 1x1 conv + ReLU -> 1x1 conv
# Layout: channels on sublanes, flattened pixels on lanes.
# ----------------------------------------------------------------------------
def _topdown_fused_kernel(x_ref, mleft_ref, mright_ref,
                          wbb_ref, bbb_ref, wnk_ref, bnk_ref, whd_ref, bhd_ref,
                          o_ref, *, H, W):
    M = H * W
    mleft = mleft_ref[...]    # (1, M): 1.0 where the left-neighbour tap is valid (w != 0)
    mright = mright_ref[...]  # (1, M): 1.0 where the right-neighbour tap is valid (w != W-1)

    # --- backbone: 3x3 conv as 9 shifted matmuls accumulated in f32 ---
    acc = None
    for ky in range(3):
        for kx in range(3):
            tap = ky * 3 + kx
            # Contiguous lane-slice of the (W+1)-halo-padded flat image == the
            # (ky, kx)-shifted input plane for every output pixel.
            slab = x_ref[0, :, pl.ds(ky * W + kx, M)]          # (C_in, M)
            if kx == 0:
                slab = slab * mleft                            # zero fake left neighbours
            elif kx == 2:
                slab = slab * mright                           # zero fake right neighbours
            contrib = jnp.dot(wbb_ref[tap], slab,              # (C_bb, C_in) @ (C_in, M)
                              preferred_element_type=jnp.float32)
            acc = contrib if acc is None else acc + contrib

    f = jnp.maximum(acc + bbb_ref[...], 0.0)                   # (C_bb, M), f32

    # --- neck: 1x1 conv + ReLU ---
    f = jnp.dot(wnk_ref[...], f.astype(wnk_ref.dtype),
                preferred_element_type=jnp.float32)
    f = jnp.maximum(f + bnk_ref[...], 0.0)                     # (C_neck, M), f32

    # --- head: 1x1 conv (no activation in eval mode) ---
    f = jnp.dot(whd_ref[...], f.astype(whd_ref.dtype),
                preferred_element_type=jnp.float32)
    o_ref[0] = (f + bhd_ref[...]).astype(o_ref.dtype)          # (K, M), lane-dense store


# ----------------------------------------------------------------------------
# TopDown forward (inference). Input/output are NCHW, like the PyTorch module.
# ----------------------------------------------------------------------------
def top_down_forward(params, x_nchw, *, compute_dtype=jnp.bfloat16):
    N, C, H, W = x_nchw.shape
    M = H * W
    L = M + 2 * W + 2                 # flat image + (W+1) zero halo on both ends

    # --- wrapper-side prep (cheap, 1x input bytes): flatten + halo pad ---
    xf = x_nchw.reshape(N, C, M).astype(compute_dtype)
    xpf = jnp.pad(xf, ((0, 0), (0, 0), (W + 1, W + 1)))        # (N, C, L)

    # 0/1 lane masks killing cross-row bleed of the horizontal conv taps.
    col = jnp.arange(M, dtype=jnp.int32) % W
    mleft = (col != 0).astype(compute_dtype).reshape(1, M)
    mright = (col != (W - 1)).astype(compute_dtype).reshape(1, M)

    # --- weight layout: per-tap (C_out, C_in) matrices, channels-first 1x1 weights ---
    c_bb = params["bb_w"].shape[0]
    c_nk = params["nk_w"].shape[0]
    n_kpt = params["hd_w"].shape[0]
    # (C_bb, C_in, 3, 3) -> (3, 3, C_bb, C_in) -> (9, C_bb, C_in), tap index t = ky*3+kx
    wbb = jnp.transpose(params["bb_w"], (2, 3, 0, 1)).reshape(9, c_bb, C).astype(compute_dtype)
    wnk = params["nk_w"][:, :, 0, 0].astype(compute_dtype)     # (C_neck, C_bb)
    whd = params["hd_w"][:, :, 0, 0].astype(compute_dtype)     # (K, C_neck)
    bbb = params["bb_b"].reshape(c_bb, 1).astype(jnp.float32)
    bnk = params["nk_b"].reshape(c_nk, 1).astype(jnp.float32)
    bhd = params["hd_b"].reshape(n_kpt, 1).astype(jnp.float32)

    kernel = functools.partial(_topdown_fused_kernel, H=H, W=W)
    out = pl.pallas_call(
        kernel,
        out_shape=jax.ShapeDtypeStruct((N, n_kpt, M), jnp.float32),
        grid=(N,),                                             # one image per step
        in_specs=[
            pl.BlockSpec((1, C, L), lambda n: (n, 0, 0)),      # streamed per-image input
            pl.BlockSpec((1, M), lambda n: (0, 0)),            # resident masks / weights:
            pl.BlockSpec((1, M), lambda n: (0, 0)),
            pl.BlockSpec((9, c_bb, C), lambda n: (0, 0, 0)),
            pl.BlockSpec((c_bb, 1), lambda n: (0, 0)),
            pl.BlockSpec((c_nk, c_bb), lambda n: (0, 0)),
            pl.BlockSpec((c_nk, 1), lambda n: (0, 0)),
            pl.BlockSpec((n_kpt, c_nk), lambda n: (0, 0)),
            pl.BlockSpec((n_kpt, 1), lambda n: (0, 0)),
        ],
        out_specs=pl.BlockSpec((1, n_kpt, M), lambda n: (n, 0, 0)),   # lane-dense (K, H*W)
        compiler_params=pltpu.CompilerParams(
            dimension_semantics=("parallel",),                 # shard images over TCs (v7x)
            vmem_limit_bytes=32 * 1024 * 1024,                 # safe on v5e/v6e/v7x
        ),
    )(xpf, mleft, mright, wbb, bbb, wnk, bnk, whd, bhd)

    # (N, K, H*W) -> NCHW heatmaps: pure reshape, no transpose needed.
    return out.reshape(N, n_kpt, H, W)

    # TODO(synk): training-mode head(x, labels) / head.loss / head.post_process are
    # config-dependent and not part of the eval forward pass implemented here.


# ----------------------------------------------------------------------------
# Deterministic synthetic parameters + pure-JAX reference (for validation)
# ----------------------------------------------------------------------------
def init_params(key, c_in=3, c_bb=16, c_neck=32, n_kpts=8):
    ks = jax.random.split(key, 6)
    scale = 0.05
    return {
        "bb_w": scale * jax.random.normal(ks[0], (c_bb, c_in, 3, 3), jnp.float32),
        "bb_b": scale * jax.random.normal(ks[1], (c_bb,), jnp.float32),
        "nk_w": scale * jax.random.normal(ks[2], (c_neck, c_bb, 1, 1), jnp.float32),
        "nk_b": scale * jax.random.normal(ks[3], (c_neck,), jnp.float32),
        "hd_w": scale * jax.random.normal(ks[4], (n_kpts, c_neck, 1, 1), jnp.float32),
        "hd_b": scale * jax.random.normal(ks[5], (n_kpts,), jnp.float32),
    }


def reference_forward(params, x):
    dn = ("NCHW", "OIHW", "NCHW")
    hi = jax.lax.Precision.HIGHEST
    y = jax.lax.conv_general_dilated(x, params["bb_w"], (1, 1), "SAME",
                                     dimension_numbers=dn, precision=hi)
    y = jax.nn.relu(y + params["bb_b"][None, :, None, None])
    y = jax.lax.conv_general_dilated(y, params["nk_w"], (1, 1), "SAME",
                                     dimension_numbers=dn, precision=hi)
    y = jax.nn.relu(y + params["nk_b"][None, :, None, None])
    y = jax.lax.conv_general_dilated(y, params["hd_w"], (1, 1), "SAME",
                                     dimension_numbers=dn, precision=hi)
    return y + params["hd_b"][None, :, None, None]


if __name__ == "__main__":
    key = jax.random.PRNGKey(0)
    k_param, k_inp = jax.random.split(key)

    params = init_params(k_param)
    x = jax.random.normal(k_inp, (2, 3, 16, 16), jnp.float32)   # NCHW image batch

    fwd = jax.jit(top_down_forward)                                              # bf16 compute
    fwd_f32 = jax.jit(functools.partial(top_down_forward, compute_dtype=jnp.float32))
    ref_fn = jax.jit(reference_forward)

    out = fwd(params, x)
    out_f32 = fwd_f32(params, x)
    ref = ref_fn(params, x)
    jax.block_until_ready((out, out_f32, ref))

    assert out.shape == (2, 8, 16, 16), out.shape
    assert out.dtype == jnp.float32
    assert bool(jnp.all(jnp.isfinite(out)))
    # f32-compute kernel must match the XLA conv reference; bf16 within rounding.
    assert bool(jnp.allclose(out_f32, ref, atol=1e-3, rtol=1e-2)), \
        float(jnp.max(jnp.abs(out_f32 - ref)))
    assert bool(jnp.allclose(out, ref, atol=1e-2, rtol=1e-1)), \
        float(jnp.max(jnp.abs(out - ref)))
    print("KERNEL_OK")
</pallas_src>

<mosaic_0001>
module attributes {stable_mosaic.version = 11 : i64} {
  func.func @_topdown_fused_kernel(%arg0: i32, %arg1: memref<1x3x290xbf16, #tpu.memory_space<vmem>>, %arg2: memref<1x256xbf16, #tpu.memory_space<vmem>>, %arg3: memref<1x256xbf16, #tpu.memory_space<vmem>>, %arg4: memref<9x16x3xbf16, #tpu.memory_space<vmem>>, %arg5: memref<16x1xf32, #tpu.memory_space<vmem>>, %arg6: memref<32x16xbf16, #tpu.memory_space<vmem>>, %arg7: memref<32x1xf32, #tpu.memory_space<vmem>>, %arg8: memref<8x32xbf16, #tpu.memory_space<vmem>>, %arg9: memref<8x1xf32, #tpu.memory_space<vmem>>, %arg10: memref<1x8x256xf32, #tpu.memory_space<vmem>>) attributes {dimension_semantics = [#tpu.dimension_semantics<parallel>], iteration_bounds = array<i64: 2>, scalar_prefetch = 0 : i64, scratch_operands = 0 : i64, tpu.core_type = #tpu.core_type<tc>, window_params = [{transform_indices = @transform_0, window_bounds = array<i64: 1, 3, 290>}, {pipeline_mode = #tpu.pipeline_mode<synchronous>, transform_indices = @transform_1, window_bounds = array<i64: 1, 256>}, {pipeline_mode = #tpu.pipeline_mode<synchronous>, transform_indices = @transform_2, window_bounds = array<i64: 1, 256>}, {pipeline_mode = #tpu.pipeline_mode<synchronous>, transform_indices = @transform_3, window_bounds = array<i64: 9, 16, 3>}, {pipeline_mode = #tpu.pipeline_mode<synchronous>, transform_indices = @transform_4, window_bounds = array<i64: 16, 1>}, {pipeline_mode = #tpu.pipeline_mode<synchronous>, transform_indices = @transform_5, window_bounds = array<i64: 32, 16>}, {pipeline_mode = #tpu.pipeline_mode<synchronous>, transform_indices = @transform_6, window_bounds = array<i64: 32, 1>}, {pipeline_mode = #tpu.pipeline_mode<synchronous>, transform_indices = @transform_7, window_bounds = array<i64: 8, 32>}, {pipeline_mode = #tpu.pipeline_mode<synchronous>, transform_indices = @transform_8, window_bounds = array<i64: 8, 1>}, {transform_indices = @transform_9, window_bounds = array<i64: 1, 8, 256>}]} {
    %c0 = arith.constant 0 : index
    %c0_0 = arith.constant 0 : index
    %0 = vector.load %arg2[%c0, %c0_0] : memref<1x256xbf16, #tpu.memory_space<vmem>>, vector<1x256xbf16>
    %c0_1 = arith.constant 0 : index
    %c0_2 = arith.constant 0 : index
    %1 = vector.load %arg3[%c0_1, %c0_2] : memref<1x256xbf16, #tpu.memory_space<vmem>>, vector<1x256xbf16>
    %c0_3 = arith.constant 0 : index
    %c0_4 = arith.constant 0 : index
    %c0_5 = arith.constant 0 : index
    %2 = vector.load %arg1[%c0_3, %c0_4, %c0_5] : memref<1x3x290xbf16, #tpu.memory_space<vmem>>, vector<1x3x256xbf16>
    %3 = vector.shape_cast %2 : vector<1x3x256xbf16> to vector<3x256xbf16>
    %4 = vector.broadcast %0 : vector<1x256xbf16> to vector<3x256xbf16>
    %5 = arith.mulf %3, %4 : vector<3x256xbf16>
    %c0_6 = arith.constant 0 : index
    %c0_7 = arith.constant 0 : index
    %c0_8 = arith.constant 0 : index
    %6 = vector.load %arg4[%c0_6, %c0_7, %c0_8] : memref<9x16x3xbf16, #tpu.memory_space<vmem>>, vector<1x16x3xbf16>
    %7 = vector.shape_cast %6 : vector<1x16x3xbf16> to vector<16x3xbf16>
    %cst = arith.constant dense<0.000000e+00> : vector<16x256xf32>
    %8 = tpu.matmul %7, %5, %cst {dimension_numbers = #tpu.dot_dimension_numbers<[1], [0], [0], [1], [0, 0, 1, 1], [], []>} : vector<16x3xbf16>, vector<3x256xbf16>, vector<16x256xf32> -> vector<16x256xf32>
    %c0_9 = arith.constant 0 : index
    %c0_10 = arith.constant 0 : index
    %c1 = arith.constant 1 : index
    %9 = vector.load %arg1[%c0_9, %c0_10, %c1] : memref<1x3x290xbf16, #tpu.memory_space<vmem>>, vector<1x3x256xbf16>
    %10 = vector.shape_cast %9 : vector<1x3x256xbf16> to vector<3x256xbf16>
    %c1_11 = arith.constant 1 : index
    %c0_12 = arith.constant 0 : index
    %c0_13 = arith.constant 0 : index
    %11 = vector.load %arg4[%c1_11, %c0_12, %c0_13] : memref<9x16x3xbf16, #tpu.memory_space<vmem>>, vector<1x16x3xbf16>
    %12 = vector.shape_cast %11 : vector<1x16x3xbf16> to vector<16x3xbf16>
    %cst_14 = arith.constant dense<0.000000e+00> : vector<16x256xf32>
    %13 = tpu.matmul %12, %10, %cst_14 {dimension_numbers = #tpu.dot_dimension_numbers<[1], [0], [0], [1], [0, 0, 1, 1], [], []>} : vector<16x3xbf16>, vector<3x256xbf16>, vector<16x256xf32> -> vector<16x256xf32>
    %14 = arith.addf %8, %13 : vector<16x256xf32>
    %c0_15 = arith.constant 0 : index
    %c0_16 = arith.constant 0 : index
    %c2 = arith.constant 2 : index
    %15 = vector.load %arg1[%c0_15, %c0_16, %c2] : memref<1x3x290xbf16, #tpu.memory_space<vmem>>, vector<1x3x256xbf16>
    %16 = vector.shape_cast %15 : vector<1x3x256xbf16> to vector<3x256xbf16>
    %17 = vector.broadcast %1 : vector<1x256xbf16> to vector<3x256xbf16>
    %18 = arith.mulf %16, %17 : vector<3x256xbf16>
    %c2_17 = arith.constant 2 : index
    %c0_18 = arith.constant 0 : index
    %c0_19 = arith.constant 0 : index
    %19 = vector.load %arg4[%c2_17, %c0_18, %c0_19] : memref<9x16x3xbf16, #tpu.memory_space<vmem>>, vector<1x16x3xbf16>
    %20 = vector.shape_cast %19 : vector<1x16x3xbf16> to vector<16x3xbf16>
    %cst_20 = arith.constant dense<0.000000e+00> : vector<16x256xf32>
    %21 = tpu.matmul %20, %18, %cst_20 {dimension_numbers = #tpu.dot_dimension_numbers<[1], [0], [0], [1], [0, 0, 1, 1], [], []>} : vector<16x3xbf16>, vector<3x256xbf16>, vector<16x256xf32> -> vector<16x256xf32>
    %22 = arith.addf %14, %21 : vector<16x256xf32>
    %c0_21 = arith.constant 0 : index
    %c0_22 = arith.constant 0 : index
    %c16 = arith.constant 16 : index
    %23 = vector.load %arg1[%c0_21, %c0_22, %c16] : memref<1x3x290xbf16, #tpu.memory_space<vmem>>, vector<1x3x256xbf16>
    %24 = vector.shape_cast %23 : vector<1x3x256xbf16> to vector<3x256xbf16>
    %25 = vector.broadcast %0 : vector<1x256xbf16> to vector<3x256xbf16>
    %26 = arith.mulf %24, %25 : vector<3x256xbf16>
    %c3 = arith.constant 3 : index
    %c0_23 = arith.constant 0 : index
    %c0_24 = arith.constant 0 : index
    %27 = vector.load %arg4[%c3, %c0_23, %c0_24] : memref<9x16x3xbf16, #tpu.memory_space<vmem>>, vector<1x16x3xbf16>
    %28 = vector.shape_cast %27 : vector<1x16x3xbf16> to vector<16x3xbf16>
    %cst_25 = arith.constant dense<0.000000e+00> : vector<16x256xf32>
    %29 = tpu.matmul %28, %26, %cst_25 {dimension_numbers = #tpu.dot_dimension_numbers<[1], [0], [0], [1], [0, 0, 1, 1], [], []>} : vector<16x3xbf16>, vector<3x256xbf16>, vector<16x256xf32> -> vector<16x256xf32>
    %30 = arith.addf %22, %29 : vector<16x256xf32>
    %c0_26 = arith.constant 0 : index
    %c0_27 = arith.constant 0 : index
    %c17 = arith.constant 17 : index
    %31 = vector.load %arg1[%c0_26, %c0_27, %c17] : memref<1x3x290xbf16, #tpu.memory_space<vmem>>, vector<1x3x256xbf16>
    %32 = vector.shape_cast %31 : vector<1x3x256xbf16> to vector<3x256xbf16>
    %c4 = arith.constant 4 : index
    %c0_28 = arith.constant 0 : index
    %c0_29 = arith.constant 0 : index
    %33 = vector.load %arg4[%c4, %c0_28, %c0_29] : memref<9x16x3xbf16, #tpu.memory_space<vmem>>, vector<1x16x3xbf16>
    %34 = vector.shape_cast %33 : vector<1x16x3xbf16> to vector<16x3xbf16>
    %cst_30 = arith.constant dense<0.000000e+00> : vector<16x256xf32>
    %35 = tpu.matmul %34, %32, %cst_30 {dimension_numbers = #tpu.dot_dimension_numbers<[1], [0], [0], [1], [0, 0, 1, 1], [], []>} : vector<16x3xbf16>, vector<3x256xbf16>, vector<16x256xf32> -> vector<16x256xf32>
    %36 = arith.addf %30, %35 : vector<16x256xf32>
    %c0_31 = arith.constant 0 : index
    %c0_32 = arith.constant 0 : index
    %c18 = arith.constant 18 : index
    %37 = vector.load %arg1[%c0_31, %c0_32, %c18] : memref<1x3x290xbf16, #tpu.memory_space<vmem>>, vector<1x3x256xbf16>
    %38 = vector.shape_cast %37 : vector<1x3x256xbf16> to vector<3x256xbf16>
    %39 = vector.broadcast %1 : vector<1x256xbf16> to vector<3x256xbf16>
    %40 = arith.mulf %38, %39 : vector<3x256xbf16>
    %c5 = arith.constant 5 : index
    %c0_33 = arith.constant 0 : index
    %c0_34 = arith.constant 0 : index
    %41 = vector.load %arg4[%c5, %c0_33, %c0_34] : memref<9x16x3xbf16, #tpu.memory_space<vmem>>, vector<1x16x3xbf16>
    %42 = vector.shape_cast %41 : vector<1x16x3xbf16> to vector<16x3xbf16>
    %cst_35 = arith.constant dense<0.000000e+00> : vector<16x256xf32>
    %43 = tpu.matmul %42, %40, %cst_35 {dimension_numbers = #tpu.dot_dimension_numbers<[1], [0], [0], [1], [0, 0, 1, 1], [], []>} : vector<16x3xbf16>, vector<3x256xbf16>, vector<16x256xf32> -> vector<16x256xf32>
    %44 = arith.addf %36, %43 : vector<16x256xf32>
    %c0_36 = arith.constant 0 : index
    %c0_37 = arith.constant 0 : index
    %c32 = arith.constant 32 : index
    %45 = vector.load %arg1[%c0_36, %c0_37, %c32] : memref<1x3x290xbf16, #tpu.memory_space<vmem>>, vector<1x3x256xbf16>
    %46 = vector.shape_cast %45 : vector<1x3x256xbf16> to vector<3x256xbf16>
    %47 = vector.broadcast %0 : vector<1x256xbf16> to vector<3x256xbf16>
    %48 = arith.mulf %46, %47 : vector<3x256xbf16>
    %c6 = arith.constant 6 : index
    %c0_38 = arith.constant 0 : index
    %c0_39 = arith.constant 0 : index
    %49 = vector.load %arg4[%c6, %c0_38, %c0_39] : memref<9x16x3xbf16, #tpu.memory_space<vmem>>, vector<1x16x3xbf16>
    %50 = vector.shape_cast %49 : vector<1x16x3xbf16> to vector<16x3xbf16>
    %cst_40 = arith.constant dense<0.000000e+00> : vector<16x256xf32>
    %51 = tpu.matmul %50, %48, %cst_40 {dimension_numbers = #tpu.dot_dimension_numbers<[1], [0], [0], [1], [0, 0, 1, 1], [], []>} : vector<16x3xbf16>, vector<3x256xbf16>, vector<16x256xf32> -> vector<16x256xf32>
    %52 = arith.addf %44, %51 : vector<16x256xf32>
    %c0_41 = arith.constant 0 : index
    %c0_42 = arith.constant 0 : index
    %c33 = arith.constant 33 : index
    %53 = vector.load %arg1[%c0_41, %c0_42, %c33] : memref<1x3x290xbf16, #tpu.memory_space<vmem>>, vector<1x3x256xbf16>
    %54 = vector.shape_cast %53 : vector<1x3x256xbf16> to vector<3x256xbf16>
    %c7 = arith.constant 7 : index
    %c0_43 = arith.constant 0 : index
    %c0_44 = arith.constant 0 : index
    %55 = vector.load %arg4[%c7, %c0_43, %c0_44] : memref<9x16x3xbf16, #tpu.memory_space<vmem>>, vector<1x16x3xbf16>
    %56 = vector.shape_cast %55 : vector<1x16x3xbf16> to vector<16x3xbf16>
    %cst_45 = arith.constant dense<0.000000e+00> : vector<16x256xf32>
    %57 = tpu.matmul %56, %54, %cst_45 {dimension_numbers = #tpu.dot_dimension_numbers<[1], [0], [0], [1], [0, 0, 1, 1], [], []>} : vector<16x3xbf16>, vector<3x256xbf16>, vector<16x256xf32> -> vector<16x256xf32>
    %58 = arith.addf %52, %57 : vector<16x256xf32>
    %c0_46 = arith.constant 0 : index
    %c0_47 = arith.constant 0 : index
    %c34 = arith.constant 34 : index
    %59 = vector.load %arg1[%c0_46, %c0_47, %c34] : memref<1x3x290xbf16, #tpu.memory_space<vmem>>, vector<1x3x256xbf16>
    %60 = vector.shape_cast %59 : vector<1x3x256xbf16> to vector<3x256xbf16>
    %61 = vector.broadcast %1 : vector<1x256xbf16> to vector<3x256xbf16>
    %62 = arith.mulf %60, %61 : vector<3x256xbf16>
    %c8 = arith.constant 8 : index
    %c0_48 = arith.constant 0 : index
    %c0_49 = arith.constant 0 : index
    %63 = vector.load %arg4[%c8, %c0_48, %c0_49] : memref<9x16x3xbf16, #tpu.memory_space<vmem>>, vector<1x16x3xbf16>
    %64 = vector.shape_cast %63 : vector<1x16x3xbf16> to vector<16x3xbf16>
    %cst_50 = arith.constant dense<0.000000e+00> : vector<16x256xf32>
    %65 = tpu.matmul %64, %62, %cst_50 {dimension_numbers = #tpu.dot_dimension_numbers<[1], [0], [0], [1], [0, 0, 1, 1], [], []>} : vector<16x3xbf16>, vector<3x256xbf16>, vector<16x256xf32> -> vector<16x256xf32>
    %66 = arith.addf %58, %65 : vector<16x256xf32>
    %c0_51 = arith.constant 0 : index
    %c0_52 = arith.constant 0 : index
    %67 = vector.load %arg5[%c0_51, %c0_52] : memref<16x1xf32, #tpu.memory_space<vmem>>, vector<16x1xf32>
    %68 = vector.broadcast %67 : vector<16x1xf32> to vector<16x256xf32>
    %69 = arith.addf %66, %68 : vector<16x256xf32>
    %cst_53 = arith.constant 0.000000e+00 : f32
    %70 = vector.broadcast %cst_53 : f32 to vector<16x256xf32>
    %71 = arith.maximumf %69, %70 : vector<16x256xf32>
    %c0_54 = arith.constant 0 : index
    %c0_55 = arith.constant 0 : index
    %72 = vector.load %arg6[%c0_54, %c0_55] : memref<32x16xbf16, #tpu.memory_space<vmem>>, vector<32x16xbf16>
    %73 = arith.truncf %71 : vector<16x256xf32> to vector<16x256xbf16>
    %cst_56 = arith.constant dense<0.000000e+00> : vector<32x256xf32>
    %74 = tpu.matmul %72, %73, %cst_56 {dimension_numbers = #tpu.dot_dimension_numbers<[1], [0], [0], [1], [0, 0, 1, 1], [], []>} : vector<32x16xbf16>, vector<16x256xbf16>, vector<32x256xf32> -> vector<32x256xf32>
    %c0_57 = arith.constant 0 : index
    %c0_58 = arith.constant 0 : index
    %75 = vector.load %arg7[%c0_57, %c0_58] : memref<32x1xf32, #tpu.memory_space<vmem>>, vector<32x1xf32>
    %76 = vector.broadcast %75 : vector<32x1xf32> to vector<32x256xf32>
    %77 = arith.addf %74, %76 : vector<32x256xf32>
    %cst_59 = arith.constant 0.000000e+00 : f32
    %78 = vector.broadcast %cst_59 : f32 to vector<32x256xf32>
    %79 = arith.maximumf %77, %78 : vector<32x256xf32>
    %c0_60 = arith.constant 0 : index
    %c0_61 = arith.constant 0 : index
    %80 = vector.load %arg8[%c0_60, %c0_61] : memref<8x32xbf16, #tpu.memory_space<vmem>>, vector<8x32xbf16>
    %81 = arith.truncf %79 : vector<32x256xf32> to vector<32x256xbf16>
    %cst_62 = arith.constant dense<0.000000e+00> : vector<8x256xf32>
    %82 = tpu.matmul %80, %81, %cst_62 {dimension_numbers = #tpu.dot_dimension_numbers<[1], [0], [0], [1], [0, 0, 1, 1], [], []>} : vector<8x32xbf16>, vector<32x256xbf16>, vector<8x256xf32> -> vector<8x256xf32>
    %c0_63 = arith.constant 0 : index
    %c0_64 = arith.constant 0 : index
    %83 = vector.load %arg9[%c0_63, %c0_64] : memref<8x1xf32, #tpu.memory_space<vmem>>, vector<8x1xf32>
    %84 = vector.broadcast %83 : vector<8x1xf32> to vector<8x256xf32>
    %85 = arith.addf %82, %84 : vector<8x256xf32>
    %c0_65 = arith.constant 0 : index
    %c0_66 = arith.constant 0 : index
    %c0_67 = arith.constant 0 : index
    %86 = vector.load %arg10[%c0_65, %c0_66, %c0_67] : memref<1x8x256xf32, #tpu.memory_space<vmem>>, vector<1x8x256xf32>
    %87 = vector.shape_cast %86 : vector<1x8x256xf32> to vector<8x256xf32>
    %88 = vector.shape_cast %85 : vector<8x256xf32> to vector<1x8x256xf32>
    tpu.vector_store %arg10[%c0_65, %c0_66, %c0_67], %88 {strides = array<i32>} : memref<1x8x256xf32, #tpu.memory_space<vmem>>, vector<1x8x256xf32>,
    return
  }
  func.func @transform_0(%arg0: i32) -> (i32, i32, i32) {
    %c0_i32 = arith.constant 0 : i32
    %c0_i32_0 = arith.constant 0 : i32
    %c0_i32_1 = arith.constant 0 : i32
    return %arg0, %c0_i32, %c0_i32_0 : i32, i32, i32
  }
  func.func @transform_1(%arg0: i32) -> (i32, i32) {
    %c0_i32 = arith.constant 0 : i32
    %c0_i32_0 = arith.constant 0 : i32
    %c0_i32_1 = arith.constant 0 : i32
    return %c0_i32, %c0_i32_0 : i32, i32
  }
  func.func @transform_2(%arg0: i32) -> (i32, i32) {
    %c0_i32 = arith.constant 0 : i32
    %c0_i32_0 = arith.constant 0 : i32
    %c0_i32_1 = arith.constant 0 : i32
    return %c0_i32, %c0_i32_0 : i32, i32
  }
  func.func @transform_3(%arg0: i32) -> (i32, i32, i32) {
    %c0_i32 = arith.constant 0 : i32
    %c0_i32_0 = arith.constant 0 : i32
    %c0_i32_1 = arith.constant 0 : i32
    %c0_i32_2 = arith.constant 0 : i32
    return %c0_i32, %c0_i32_0, %c0_i32_1 : i32, i32, i32
  }
  func.func @transform_4(%arg0: i32) -> (i32, i32) {
    %c0_i32 = arith.constant 0 : i32
    %c0_i32_0 = arith.constant 0 : i32
    %c0_i32_1 = arith.constant 0 : i32
    return %c0_i32, %c0_i32_0 : i32, i32
  }
  func.func @transform_5(%arg0: i32) -> (i32, i32) {
    %c0_i32 = arith.constant 0 : i32
    %c0_i32_0 = arith.constant 0 : i32
    %c0_i32_1 = arith.constant 0 : i32
    return %c0_i32, %c0_i32_0 : i32, i32
  }
  func.func @transform_6(%arg0: i32) -> (i32, i32) {
    %c0_i32 = arith.constant 0 : i32
    %c0_i32_0 = arith.constant 0 : i32
    %c0_i32_1 = arith.constant 0 : i32
    return %c0_i32, %c0_i32_0 : i32, i32
  }
  func.func @transform_7(%arg0: i32) -> (i32, i32) {
    %c0_i32 = arith.constant 0 : i32
    %c0_i32_0 = arith.constant 0 : i32
    %c0_i32_1 = arith.constant 0 : i32
    return %c0_i32, %c0_i32_0 : i32, i32
  }
  func.func @transform_8(%arg0: i32) -> (i32, i32) {
    %c0_i32 = arith.constant 0 : i32
    %c0_i32_0 = arith.constant 0 : i32
    %c0_i32_1 = arith.constant 0 : i32
    return %c0_i32, %c0_i32_0 : i32, i32
  }
  func.func @transform_9(%arg0: i32) -> (i32, i32, i32) {
    %c0_i32 = arith.constant 0 : i32
    %c0_i32_0 = arith.constant 0 : i32
    %c0_i32_1 = arith.constant 0 : i32
    return %arg0, %c0_i32, %c0_i32_0 : i32, i32, i32
  }
}

</mosaic_0001>

<llo_original>
// kernel: top_down_forward.1
$region0: #{top_down_forward.1}
  #allocation0 [shape = 'u32[]', space=smem, size = 0x4, offset = 0x4, fixed_abs, tag = 'smem constant byte address 0x4 - core index']
  #allocation1 [shape = 'u32[144,128]{1,0:T(1,128)}', space=vmem, size = 0x12000, scoped, tag = 'internal scratch']
  %s0 = inlined_call_operand.vmem [shape: bf16[2,3,290], index: 0, kind: input, shape index: {}]
  %s1 = inlined_call_operand.vmem [shape: bf16[1,256], index: 1, kind: input, shape index: {}]
  %s2 = inlined_call_operand.vmem [shape: bf16[1,256], index: 2, kind: input, shape index: {}]
  %s3 = inlined_call_operand.vmem [shape: bf16[9,16,3], index: 3, kind: input, shape index: {}]
  %s4 = inlined_call_operand.vmem [shape: f32[16,1], index: 4, kind: input, shape index: {}]
  %s5 = inlined_call_operand.vmem [shape: bf16[32,16], index: 5, kind: input, shape index: {}]
  %s6 = inlined_call_operand.vmem [shape: f32[32,1], index: 6, kind: input, shape index: {}]
  %s7 = inlined_call_operand.vmem [shape: bf16[8,32], index: 7, kind: input, shape index: {}]
  %s8 = inlined_call_operand.vmem [shape: f32[8,1], index: 8, kind: input, shape index: {}]
  %s9 = inlined_call_operand.vmem [shape: f32[2,8,256], index: 9, kind: output, shape index: {}]
  %s10 = sld [smem:[#allocation0]]
  $region69: #{top_down_forward.1} parent=0
    _
  %s12 = ssub.s32 1, %s10
  %s13 = scalar_select 0, %s12, %s10
  loop: start=0, step=1, limit=4
  $region2: #{top_down_forward.1} parent=0 // loop_pre_header
    _
  $region3: #{top_down_forward.1} parent=0 // loop_header
    %s15 = sphi 0, %s19
    %p16 = scmp.ge.s32.totalorder %s15, 4
    %s25 = sphi 0, %s27
    %s28 = sphi 0, %s25
    %s29 = sphi 0, %s28
    %s45 = sphi 0, %s29
    %s49 = sphi 0, %s49
    %s51 = sphi 0, %s49
    %s52 = sphi 0, %s51
    %s66 = sphi 0, %s52
    %s70 = sphi 0, %s70
    %s72 = sphi 0, %s70
    %s73 = sphi 0, %s72
    %s87 = sphi 0, %s73
    %s91 = sphi 0, %s91
    %s93 = sphi 0, %s91
    %s94 = sphi 0, %s93
    %s108 = sphi 0, %s94
    %s112 = sphi 0, %s112
    %s114 = sphi 0, %s112
    %s115 = sphi 0, %s114
    %s129 = sphi 0, %s115
    %s133 = sphi 0, %s133
    %s135 = sphi 0, %s133
    %s136 = sphi 0, %s135
    %s150 = sphi 0, %s136
    %s154 = sphi 0, %s154
    %s156 = sphi 0, %s154
    %s157 = sphi 0, %s156
    %s171 = sphi 0, %s157
    %s175 = sphi 0, %s175
    %s177 = sphi 0, %s175
    %s178 = sphi 0, %s177
    %s192 = sphi 0, %s178
    %s196 = sphi 0, %s196
    %s198 = sphi 0, %s196
    %s199 = sphi 0, %s198
    %s213 = sphi 0, %s199
    %s219 = sphi 0, %s221
    %s222 = sphi 0, %s219
    %s223 = sphi 0, %s222
    %s239 = sphi 0, %s223
  $region4: #{top_down_forward.1} parent=0 // loop_header_branch
    %18 = sbr.rel (%p16) target = $region8
  $region5: #{top_down_forward.1} parent=0 // loop_body
    %s20 = ssub.s32 %s15, 1
    %s21 = ssub.s32 %s15, 2
    %s22 = sadd.s32 %s15, 1
    %s23 = ssub.s32 %s15, %s22
    %p24 = scmp.eq.s32.totalorder %s23, 0
    %s26 = sadd.s32 %s25, 1
    %s27 = scalar_select %p24, %s25, %s26
    %p30 = pneg %p24
    %p31 = scmp.eq.s32.totalorder %s15, 1
    %p32 = por %p30, %p31
    %p33 = scmp.ne.s32.totalorder %s25, %s28
    %p34 = scmp.eq.s32.totalorder %s15, 0
    %p35 = por %p33, %p34
    %p36 = scmp.ne.s32.totalorder %s25, %s28
    %p37 = scmp.eq.s32.totalorder %s20, 1
    %p38 = por %p36, %p37
    %p39 = scmp.ne.s32.totalorder %s28, %s29
    %p40 = scmp.eq.s32.totalorder %s20, 0
    %p41 = por %p39, %p40
    %p42 = scmp.ne.s32.totalorder %s28, %s29
    %p43 = scmp.eq.s32.totalorder %s21, 1
    %p44 = por %p42, %p43
    %p46 = scmp.ne.s32.totalorder %s29, %s45
    %p47 = scmp.eq.s32.totalorder %s21, 0
    %p48 = por %p46, %p47
    %s50 = sadd.s32 %s49, 1
    %p53 = scmp.eq.s32.totalorder %s15, 1
    %p54 = scmp.ne.s32.totalorder %s49, %s51
    %p55 = scmp.eq.s32.totalorder %s15, 0
    %p56 = por %p54, %p55
    %p57 = scmp.ne.s32.totalorder %s49, %s51
    %p58 = scmp.eq.s32.totalorder %s20, 1
    %p59 = por %p57, %p58
    %p60 = scmp.ne.s32.totalorder %s51, %s52
    %p61 = scmp.eq.s32.totalorder %s20, 0
    %p62 = por %p60, %p61
    %p63 = scmp.ne.s32.totalorder %s51, %s52
    %p64 = scmp.eq.s32.totalorder %s21, 1
    %p65 = por %p63, %p64
    %p67 = scmp.ne.s32.totalorder %s52, %s66
    %p68 = scmp.eq.s32.totalorder %s21, 0
    %p69 = por %p67, %p68
    %s71 = sadd.s32 %s70, 1
    %p74 = scmp.eq.s32.totalorder %s15, 1
    %p75 = scmp.ne.s32.totalorder %s70, %s72
    %p76 = scmp.eq.s32.totalorder %s15, 0
    %p77 = por %p75, %p76
    %p78 = scmp.ne.s32.totalorder %s70, %s72
    %p79 = scmp.eq.s32.totalorder %s20, 1
    %p80 = por %p78, %p79
    %p81 = scmp.ne.s32.totalorder %s72, %s73
    %p82 = scmp.eq.s32.totalorder %s20, 0
    %p83 = por %p81, %p82
    %p84 = scmp.ne.s32.totalorder %s72, %s73
    %p85 = scmp.eq.s32.totalorder %s21, 1
    %p86 = por %p84, %p85
    %p88 = scmp.ne.s32.totalorder %s73, %s87
    %p89 = scmp.eq.s32.totalorder %s21, 0
    %p90 = por %p88, %p89
    %s92 = sadd.s32 %s91, 1
    %p95 = scmp.eq.s32.totalorder %s15, 1
    %p96 = scmp.ne.s32.totalorder %s91, %s93
    %p97 = scmp.eq.s32.totalorder %s15, 0
    %p98 = por %p96, %p97
    %p99 = scmp.ne.s32.totalorder %s91, %s93
    %p100 = scmp.eq.s32.totalorder %s20, 1
    %p101 = por %p99, %p100
    %p102 = scmp.ne.s32.totalorder %s93, %s94
    %p103 = scmp.eq.s32.totalorder %s20, 0
    %p104 = por %p102, %p103
    %p105 = scmp.ne.s32.totalorder %s93, %s94
    %p106 = scmp.eq.s32.totalorder %s21, 1
    %p107 = por %p105, %p106
    %p109 = scmp.ne.s32.totalorder %s94, %s108
    %p110 = scmp.eq.s32.totalorder %s21, 0
    %p111 = por %p109, %p110
    %s113 = sadd.s32 %s112, 1
    %p116 = scmp.eq.s32.totalorder %s15, 1
    %p117 = scmp.ne.s32.totalorder %s112, %s114
    %p118 = scmp.eq.s32.totalorder %s15, 0
    %p119 = por %p117, %p118
    %p120 = scmp.ne.s32.totalorder %s112, %s114
    %p121 = scmp.eq.s32.totalorder %s20, 1
    %p122 = por %p120, %p121
    %p123 = scmp.ne.s32.totalorder %s114, %s115
    %p124 = scmp.eq.s32.totalorder %s20, 0
    %p125 = por %p123, %p124
    %p126 = scmp.ne.s32.totalorder %s114, %s115
    %p127 = scmp.eq.s32.totalorder %s21, 1
    %p128 = por %p126, %p127
    %p130 = scmp.ne.s32.totalorder %s115, %s129
    %p131 = scmp.eq.s32.totalorder %s21, 0
    %p132 = por %p130, %p131
    %s134 = sadd.s32 %s133, 1
    %p137 = scmp.eq.s32.totalorder %s15, 1
    %p138 = scmp.ne.s32.totalorder %s133, %s135
    %p139 = scmp.eq.s32.totalorder %s15, 0
    %p140 = por %p138, %p139
    %p141 = scmp.ne.s32.totalorder %s133, %s135
    %p142 = scmp.eq.s32.totalorder %s20, 1
    %p143 = por %p141, %p142
    %p144 = scmp.ne.s32.totalorder %s135, %s136
    %p145 = scmp.eq.s32.totalorder %s20, 0
    %p146 = por %p144, %p145
    %p147 = scmp.ne.s32.totalorder %s135, %s136
    %p148 = scmp.eq.s32.totalorder %s21, 1
    %p149 = por %p147, %p148
    %p151 = scmp.ne.s32.totalorder %s136, %s150
    %p152 = scmp.eq.s32.totalorder %s21, 0
    %p153 = por %p151, %p152
    %s155 = sadd.s32 %s154, 1
    %p158 = scmp.eq.s32.totalorder %s15, 1
    %p159 = scmp.ne.s32.totalorder %s154, %s156
    %p160 = scmp.eq.s32.totalorder %s15, 0
    %p161 = por %p159, %p160
    %p162 = scmp.ne.s32.totalorder %s154, %s156
    %p163 = scmp.eq.s32.totalorder %s20, 1
    %p164 = por %p162, %p163
    %p165 = scmp.ne.s32.totalorder %s156, %s157
    %p166 = scmp.eq.s32.totalorder %s20, 0
    %p167 = por %p165, %p166
    %p168 = scmp.ne.s32.totalorder %s156, %s157
    %p169 = scmp.eq.s32.totalorder %s21, 1
    %p170 = por %p168, %p169
    %p172 = scmp.ne.s32.totalorder %s157, %s171
    %p173 = scmp.eq.s32.totalorder %s21, 0
    %p174 = por %p172, %p173
    %s176 = sadd.s32 %s175, 1
    %p179 = scmp.eq.s32.totalorder %s15, 1
    %p180 = scmp.ne.s32.totalorder %s175, %s177
    %p181 = scmp.eq.s32.totalorder %s15, 0
    %p182 = por %p180, %p181
    %p183 = scmp.ne.s32.totalorder %s175, %s177
    %p184 = scmp.eq.s32.totalorder %s20, 1
    %p185 = por %p183, %p184
    %p186 = scmp.ne.s32.totalorder %s177, %s178
    %p187 = scmp.eq.s32.totalorder %s20, 0
    %p188 = por %p186, %p187
    %p189 = scmp.ne.s32.totalorder %s177, %s178
    %p190 = scmp.eq.s32.totalorder %s21, 1
    %p191 = por %p189, %p190
    %p193 = scmp.ne.s32.totalorder %s178, %s192
    %p194 = scmp.eq.s32.totalorder %s21, 0
    %p195 = por %p193, %p194
    %s197 = sadd.s32 %s196, 1
    %p200 = scmp.eq.s32.totalorder %s15, 1
    %p201 = scmp.ne.s32.totalorder %s196, %s198
    %p202 = scmp.eq.s32.totalorder %s15, 0
    %p203 = por %p201, %p202
    %p204 = scmp.ne.s32.totalorder %s196, %s198
    %p205 = scmp.eq.s32.totalorder %s20, 1
    %p206 = por %p204, %p205
    %p207 = scmp.ne.s32.totalorder %s198, %s199
    %p208 = scmp.eq.s32.totalorder %s20, 0
    %p209 = por %p207, %p208
    %p210 = scmp.ne.s32.totalorder %s198, %s199
    %p211 = scmp.eq.s32.totalorder %s21, 1
    %p212 = por %p210, %p211
    %p214 = scmp.ne.s32.totalorder %s199, %s213
    %p215 = scmp.eq.s32.totalorder %s21, 0
    %p216 = por %p214, %p215
    %s217 = ssub.s32 %s15, %s22
    %p218 = scmp.eq.s32.totalorder %s217, 0
    %s220 = sadd.s32 %s219, 1
    %s221 = scalar_select %p218, %s219, %s220
    %p224 = pneg %p218
    %p225 = scmp.eq.s32.totalorder %s15, 1
    %p226 = por %p224, %p225
    %p227 = scmp.ne.s32.totalorder %s219, %s222
    %p228 = scmp.eq.s32.totalorder %s15, 0
    %p229 = por %p227, %p228
    %p230 = scmp.ne.s32.totalorder %s219, %s222
    %p231 = scmp.eq.s32.totalorder %s20, 1
    %p232 = por %p230, %p231
    %p233 = scmp.ne.s32.totalorder %s222, %s223
    %p234 = scmp.eq.s32.totalorder %s20, 0
    %p235 = por %p233, %p234
    %p236 = scmp.ne.s32.totalorder %s222, %s223
    %p237 = scmp.eq.s32.totalorder %s21, 1
    %p238 = por %p236, %p237
    %p240 = scmp.ne.s32.totalorder %s223, %s239
    %p241 = scmp.eq.s32.totalorder %s21, 0
    %p242 = por %p240, %p241
    %p243 = scmp.le.s32.totalorder 1, %s15
    %p244 = scmp.lt.s32.totalorder %s15, 3
    %p245 = pnand %p243, %p244
    %p246 = pneg %p245
    // Predicated region
    $region9: #{top_down_forward.1} parent=5 // pred_check
      _
    $region10: #{top_down_forward.1} parent=5 // pred_check_branch
      %248 = sbr.rel (%p245) target = $region12
    $region11: #{top_down_forward.1} parent=5 // pred_region
      %s249 = ssub.s32 %s15, 1
      // Predicated region
      $region13: #{top_down_forward.1} parent=11 // pred_check
        %p250 = pneg %p62
      $region14: #{top_down_forward.1} parent=11 // pred_check_branch
        %252 = sbr.rel (%p250) target = $region16
      $region15: #{top_down_forward.1} parent=11 // pred_region
        _
      $region16: #{top_down_forward.1} parent=11 // pred_fallthru
        _
      // Predicated region
      $region17: #{top_down_forward.1} parent=11 // pred_check
        %p253 = pneg %p83
      $region18: #{top_down_forward.1} parent=11 // pred_check_branch
        %255 = sbr.rel (%p253) target = $region20
      $region19: #{top_down_forward.1} parent=11 // pred_region
        _
      $region20: #{top_down_forward.1} parent=11 // pred_fallthru
        _
      // Predicated region
      $region21: #{top_down_forward.1} parent=11 // pred_check
        %p256 = pneg %p104
      $region22: #{top_down_forward.1} parent=11 // pred_check_branch
        %258 = sbr.rel (%p256) target = $region24
      $region23: #{top_down_forward.1} parent=11 // pred_region
        _
      $region24: #{top_down_forward.1} parent=11 // pred_fallthru
        _
      // Predicated region
      $region25: #{top_down_forward.1} parent=11 // pred_check
        %p259 = pneg %p125
      $region26: #{top_down_forward.1} parent=11 // pred_check_branch
        %261 = sbr.rel (%p259) target = $region28
      $region27: #{top_down_forward.1} parent=11 // pred_region
        _
      $region28: #{top_down_forward.1} parent=11 // pred_fallthru
        _
      // Predicated region
      $region29: #{top_down_forward.1} parent=11 // pred_check
        %p262 = pneg %p146
      $region30: #{top_down_forward.1} parent=11 // pred_check_branch
        %264 = sbr.rel (%p262) target = $region32
      $region31: #{top_down_forward.1} parent=11 // pred_region
        _
      $region32: #{top_down_forward.1} parent=11 // pred_fallthru
        _
      // Predicated region
      $region33: #{top_down_forward.1} parent=11 // pred_check
        %p265 = pneg %p167
      $region34: #{top_down_forward.1} parent=11 // pred_check_branch
        %267 = sbr.rel (%p265) target = $region36
      $region35: #{top_down_forward.1} parent=11 // pred_region
        _
      $region36: #{top_down_forward.1} parent=11 // pred_fallthru
        _
      // Predicated region
      $region37: #{top_down_forward.1} parent=11 // pred_check
        %p268 = pneg %p188
      $region38: #{top_down_forward.1} parent=11 // pred_check_branch
        %270 = sbr.rel (%p268) target = $region40
      $region39: #{top_down_forward.1} parent=11 // pred_region
        _
      $region40: #{top_down_forward.1} parent=11 // pred_fallthru
        _
      // Predicated region
      $region41: #{top_down_forward.1} parent=11 // pred_check
        %p271 = pneg %p209
      $region42: #{top_down_forward.1} parent=11 // pred_check_branch
        %273 = sbr.rel (%p271) target = $region44
      $region43: #{top_down_forward.1} parent=11 // pred_region
        _
      $region44: #{top_down_forward.1} parent=11 // pred_fallthru
        _
    $region12: #{top_down_forward.1} parent=5 // pred_fallthru
      _
    %p274 = scmp.lt.s32.totalorder %s15, 2
    // Predicated region
    $region45: #{top_down_forward.1} parent=5 // pred_check
      %p275 = pneg %p274
    $region46: #{top_down_forward.1} parent=5 // pred_check_branch
      %277 = sbr.rel (%p275) target = $region48
    $region47: #{top_down_forward.1} parent=5 // pred_region
      // Predicated region
      $region49: #{top_down_forward.1} parent=47 // pred_check
        %p278 = pneg %p35
      $region50: #{top_down_forward.1} parent=47 // pred_check_branch
        %280 = sbr.rel (%p278) target = $region52
      $region51: #{top_down_forward.1} parent=47 // pred_region
        %p281 = scmp.lt.s32.totalorder %s15, 1
        %s282 = scalar_select %p281, %s15, 1
        %s283 = smul.addr %s282, 3
        %s284 = smul.addr %s283, 2
        %s285 = scalar_lea.vmem %s0, %s284
      $region52: #{top_down_forward.1} parent=47 // pred_fallthru
        _
    $region48: #{top_down_forward.1} parent=5 // pred_fallthru
      _
    %p286 = scmp.le.s32.totalorder 1, %s15
    %p287 = scmp.lt.s32.totalorder %s15, 3
    %p288 = pnand %p286, %p287
    %p289 = pneg %p288
    // Predicated region
    $region53: #{top_down_forward.1} parent=5 // pred_check
      _
    $region54: #{top_down_forward.1} parent=5 // pred_check_branch
      %291 = sbr.rel (%p288) target = $region56
    $region55: #{top_down_forward.1} parent=5 // pred_region
      %s292 = ssub.s32 %s15, 1
      %p293 = scmp.lt.s32.totalorder %s20, 1
      %s294 = scalar_select %p293, %s20, 1
      %s295 = smul.addr %s294, 3
      %s296 = smul.addr %s295, 2
      %s297 = scalar_lea.vmem %s0, %s296
      %p298 = pneg %p41
      %p299 = pneg %p38
      %p300 = pneg %p62
      %p301 = pneg %p59
      %p302 = pneg %p83
      %p303 = pneg %p80
      %p304 = pneg %p104
      %p305 = pneg %p101
      %p306 = pneg %p125
      %p307 = pneg %p122
      %p308 = pneg %p146
      %p309 = pneg %p143
      %p310 = pneg %p167
      %p311 = pneg %p164
      %p312 = pneg %p188
      %p313 = pneg %p185
      %p314 = pneg %p209
      %p315 = pneg %p206
      %p316 = pneg %p235
      %p317 = pneg %p232
      %p318 = scmp.lt.s32.totalorder %s20, 1
      %s319 = scalar_select %p318, %s20, 1
      %s320 = smul.addr %s319, 2
      %s321 = smul.addr %s320, 8
      %s322 = scalar_lea.vmem %s9, %s321
      %p323 = scmp.lt.s32.totalorder %s20, 1
      %s324 = scalar_select %p323, %s20, 1
      %s325 = smul.addr %s324, 3
      %s326 = smul.addr %s325, 2
      %s327 = scalar_lea.vmem %s0, %s326
      %p328 = scmp.lt.s32.totalorder %s20, 1
      %s329 = scalar_select %p328, %s20, 1
      %s330 = smul.addr %s329, 2
      %s331 = smul.addr %s330, 8
      %s332 = scalar_lea.vmem %s9, %s331
      %v334 = vld [vmem:[%s1] sm:$0x3]
      %v335 = vld [vmem:[%s2] sm:$0x3]
      %v336 = vld [vmem:[%s327] sm:$0xf]
      %v339 = vunpack.c.l.s4 1966171168
      %v340 = vunpack.c.0.s8 %v339
      %v341 = vlaneseq
      %v342 = vshrl.u32 %v341, 7
      %v343 = vsub.s32 %v340, %v342
      %v344 = vrot.slane %v334, %v343
      %v345 = vcombine.high %v344, %v344
      %v347 = vunpack.c.l.s4 1966171168
      %v348 = vunpack.c.0.s8 %v347
      %v349 = vlaneseq
      %v350 = vshrl.u32 %v349, 7
      %v351 = vsub.s32 %v348, %v350
      %v352 = vrot.slane %v344, %v351
      %v354 = vunpack.c.l.s4 1966171168
      %v355 = vunpack.c.0.s8 %v354
      %v356 = vlaneseq
      %v357 = vshrl.u32 %v356, 7
      %v358 = vsub.s32 %v355, %v357
      %v359 = vrot.slane %v345, %v358
      %v361 = vpack.i.b16 %v352, %v352
      %v363 = vlaneseq
      %v364 = vshrl.u32 %v363, 7
      %v365 = vsub.s32 0, %v364
      %v366 = vrot.slane %v361, %v365
      %v368 = vpack.i.b16 %v359, %v359
      %v370 = vlaneseq
      %v371 = vshrl.u32 %v370, 7
      %v372 = vsub.s32 0, %v371
      %v373 = vrot.slane %v368, %v372
      %v376 = vcombine.low %v366, %v373
      %v378 = vunpack.c.l.s4 1983009808
      %v379 = vunpack.c.0.s8 %v378
      %v380 = vlaneseq
      %v381 = vshrl.u32 %v380, 7
      %v382 = vsub.s32 %v379, %v381
      %v383 = vrot.slane %v376, %v382
      %v385 = vmul.bf16 %v336, %v383
      %v386 = vld [vmem:[%s3] sm:$0xf]
      %v387 = vld [vmem:[%s3 + $0x4] sm:$0xf]
      %v388 = vld [vmem:[%s327] sm:$0x3f]
      %s389 = scalar_lea.vmem %s3, 8
      %v390 = vld [vmem:[%s389] sm:$0xf]
      %v391 = vld [vmem:[%s389 + $0x4] sm:$0xf]
      %v394 = vunpack.c.l.b16 %v390
      %v395 = vunpack.c.l.b16 %v391
      %v396 = vpack.c.b16 %v395, %v394
      %v398 = vcombine.high %v388, %v388
      %v400 = vunpack.c.l.s4 1983009808
      %v401 = vunpack.c.0.s8 %v400
      %v402 = vlaneseq
      %v403 = vshrl.u32 %v402, 7
      %v404 = vsub.s32 %v401, %v403
      %v405 = vrot.slane %v388, %v404
      %v407 = vunpack.c.l.s4 1983009808
      %v408 = vunpack.c.0.s8 %v407
      %v409 = vlaneseq
      %v410 = vshrl.u32 %v409, 7
      %v411 = vsub.s32 %v408, %v410
      %v412 = vrot.slane %v398, %v411
      %v413 = vcombine.high %v405, %v405
      %414 = vrot.lane.b32.xlu0 %v405, 127
      %v415 = vpop.permute.xlu0 %414
      %416 = vrot.lane.b32.xlu0 %v413, 127
      %v417 = vpop.permute.xlu0 %416
      %418 = vrot.lane.b32.xlu0 %v412, 127
      %v419 = vpop.permute.xlu0 %418
      %vm420 = vcmask 1039360
      %v421 = vsel %vm420, %v415, %v417
      %v422 = vsel %vm420, %v417, %v419
      %vm423 = vcmask 23552
      %v425 = vsel %vm423, %v396, 0
      %vm427 = vcmask 1040384
      %vm428 = vcmask 1041408
      %v429 = vsel %vm427, 4294967295, 65535
      %v430 = vsel %vm428, %v429, 0
      %v432 = vand.u32 %v421, %v430
      %v435 = vand.u32 %v422, %v430
      %437 = vmatprep.subr.bf16.mxu0 %v435
      %438 = vmatpush1.bf16.msra.mxu0 %v432
      %439 = vmatprep.subr.bf16.mxu0 0
      %440 = vmatpush1.bf16.msra.mxu0 0
      %441 = vmatprep.subr.bf16.mxu0 0
      %442 = vmatpush1.bf16.msra.mxu0 0
      %443 = vmatprep.subr.bf16.mxu0 0
      %444 = vmatpush1.bf16.msra.mxu0 0
      %445 = vmatprep.subr.bf16.mxu0 0
      %446 = vmatpush1.bf16.msra.mxu0 0
      %447 = vmatprep.subr.bf16.mxu0 0
      %448 = vmatpush1.bf16.msra.mxu0 0
      %449 = vmatprep.subr.bf16.mxu0 0
      %450 = vmatpush1.bf16.msra.mxu0 0
      %451 = vmatprep.subr.bf16.mxu0 0
      %452 = vmatpush1.bf16.msra.mxu0 0
      %453 = vmatprep.subr.bf16.mxu0 0
      %454 = vmatpush1.bf16.msra.mxu0 0
      %455 = vmatprep.subr.bf16.mxu0 0
      %456 = vmatpush1.bf16.msra.mxu0 0
      %457 = vmatprep.subr.bf16.mxu0 0
      %458 = vmatpush1.bf16.msra.mxu0 0
      %459 = vmatprep.subr.bf16.mxu0 0
      %460 = vmatpush1.bf16.msra.mxu0 0
      %461 = vmatprep.subr.bf16.mxu0 0
      %462 = vmatpush1.bf16.msra.mxu0 0
      %463 = vmatprep.subr.bf16.mxu0 0
      %464 = vmatpush1.bf16.msra.mxu0 0
      %465 = vmatprep.subr.bf16.mxu0 0
      %466 = vmatpush1.bf16.msra.mxu0 0
      %467 = vmatprep.subr.bf16.mxu0 0
      %468 = vmatpush1.bf16.msra.mxu0 0
      %469 = vmatprep.mubr.bf16.mxu0 0
      %470 = vmatmul.mubr.bf16.gmra.mrb[0].mxu0 %v425
      %v471 = vpop.f32.mrb[0].mxu0
      %v472 = vadd.f32 0.0, %v471
      %v473 = vpop.f32.mrb[0].mxu0
      %v474 = vadd.f32 0.0, %v473
      %v475 = vpop.f32.mrb[0].mxu0
      %v476 = vadd.f32 0.0, %v475
      %v477 = vpop.f32.mrb[0].mxu0
      %v478 = vadd.f32 0.0, %v477
      %479 = vdwg.mxu0
      %v482 = vunpack.c.l.b16 %v386
      %v483 = vunpack.c.l.b16 %v387
      %v484 = vpack.c.b16 %v483, %v482
      %v487 = vunpack.c.l.s4 1983009808
      %v488 = vunpack.c.0.s8 %v487
      %v489 = vlaneseq
      %v490 = vshrl.u32 %v489, 7
      %v491 = vsub.s32 %v488, %v490
      %v492 = vrot.slane %v385, %v491
      %v493 = vcombine.high %v492, %v492
      %v495 = vsel %vm423, %v484, 0
      %v498 = vand.u32 %v492, %v430
      %v501 = vand.u32 %v493, %v430
      %503 = vmatprep.subr.bf16.mxu0 %v501
      %504 = vmatpush1.bf16.msra.mxu0 %v498
      %505 = vmatprep.subr.bf16.mxu0 0
      %506 = vmatpush1.bf16.msra.mxu0 0
      %507 = vmatprep.subr.bf16.mxu0 0
      %508 = vmatpush1.bf16.msra.mxu0 0
      %509 = vmatprep.subr.bf16.mxu0 0
      %510 = vmatpush1.bf16.msra.mxu0 0
      %511 = vmatprep.subr.bf16.mxu0 0
      %512 = vmatpush1.bf16.msra.mxu0 0
      %513 = vmatprep.subr.bf16.mxu0 0
      %514 = vmatpush1.bf16.msra.mxu0 0
      %515 = vmatprep.subr.bf16.mxu0 0
      %516 = vmatpush1.bf16.msra.mxu0 0
      %517 = vmatprep.subr.bf16.mxu0 0
      %518 = vmatpush1.bf16.msra.mxu0 0
      %519 = vmatprep.subr.bf16.mxu0 0
      %520 = vmatpush1.bf16.msra.mxu0 0
      %521 = vmatprep.subr.bf16.mxu0 0
      %522 = vmatpush1.bf16.msra.mxu0 0
      %523 = vmatprep.subr.bf16.mxu0 0
      %524 = vmatpush1.bf16.msra.mxu0 0
      %525 = vmatprep.subr.bf16.mxu0 0
      %526 = vmatpush1.bf16.msra.mxu0 0
      %527 = vmatprep.subr.bf16.mxu0 0
      %528 = vmatpush1.bf16.msra.mxu0 0
      %529 = vmatprep.subr.bf16.mxu0 0
      %530 = vmatpush1.bf16.msra.mxu0 0
      %531 = vmatprep.subr.bf16.mxu0 0
      %532 = vmatpush1.bf16.msra.mxu0 0
      %533 = vmatprep.subr.bf16.mxu0 0
      %534 = vmatpush1.bf16.msra.mxu0 0
      %535 = vmatprep.mubr.bf16.mxu0 0
      %536 = vmatmul.mubr.bf16.gmra.mrb[0].mxu0 %v495
      %v537 = vpop.f32.mrb[0].mxu0
      %v538 = vadd.f32 %v472, %v537
      %v539 = vpop.f32.mrb[0].mxu0
      %v540 = vadd.f32 %v474, %v539
      %v541 = vpop.f32.mrb[0].mxu0
      %v542 = vadd.f32 %v476, %v541
      %v543 = vpop.f32.mrb[0].mxu0
      %v544 = vadd.f32 %v478, %v543
      %545 = vdwg.mxu0
      %v546 = vld [vmem:[%s327] sm:$0x3f]
      %v549 = vunpack.c.l.s4 1966171168
      %v550 = vunpack.c.0.s8 %v549
      %v551 = vlaneseq
      %v552 = vshrl.u32 %v551, 7
      %v553 = vsub.s32 %v550, %v552
      %v554 = vrot.slane %v335, %v553
      %v555 = vcombine.high %v554, %v554
      %v557 = vunpack.c.l.s4 1966171168
      %v558 = vunpack.c.0.s8 %v557
      %v559 = vlaneseq
      %v560 = vshrl.u32 %v559, 7
      %v561 = vsub.s32 %v558, %v560
      %v562 = vrot.slane %v554, %v561
      %v564 = vunpack.c.l.s4 1966171168
      %v565 = vunpack.c.0.s8 %v564
      %v566 = vlaneseq
      %v567 = vshrl.u32 %v566, 7
      %v568 = vsub.s32 %v565, %v567
      %v569 = vrot.slane %v555, %v568
      %v571 = vpack.i.b16 %v562, %v562
      %v573 = vlaneseq
      %v574 = vshrl.u32 %v573, 7
      %v575 = vsub.s32 0, %v574
      %v576 = vrot.slane %v571, %v575
      %v578 = vpack.i.b16 %v569, %v569
      %v580 = vlaneseq
      %v581 = vshrl.u32 %v580, 7
      %v582 = vsub.s32 0, %v581
      %v583 = vrot.slane %v578, %v582
      %v586 = vcombine.low %v576, %v583
      %v588 = vunpack.c.l.s4 1983009808
      %v589 = vunpack.c.0.s8 %v588
      %v590 = vlaneseq
      %v591 = vshrl.u32 %v590, 7
      %v592 = vsub.s32 %v589, %v591
      %v593 = vrot.slane %v586, %v592
      %594 = vrot.lane.b32.xlu0 %v593, 2
      %v595 = vpop.permute.xlu0 %594
      %v596 = vrot.slane %v595, 6
      %vm597 = vcmask 15360
      %v598 = vsel %vm597, %v596, %v595
      %v600 = vmul.bf16 %v546, %v598
      %s601 = scalar_lea.vmem %s3, 16
      %v602 = vld [vmem:[%s601] sm:$0xf]
      %v603 = vld [vmem:[%s601 + $0x4] sm:$0xf]
      %v606 = vunpack.c.l.b16 %v602
      %v607 = vunpack.c.l.b16 %v603
      %v608 = vpack.c.b16 %v607, %v606
      %v610 = vcombine.high %v600, %v600
      %v612 = vunpack.c.l.s4 1983009808
      %v613 = vunpack.c.0.s8 %v612
      %v614 = vlaneseq
      %v615 = vshrl.u32 %v614, 7
      %v616 = vsub.s32 %v613, %v615
      %v617 = vrot.slane %v600, %v616
      %v619 = vunpack.c.l.s4 1983009808
      %v620 = vunpack.c.0.s8 %v619
      %v621 = vlaneseq
      %v622 = vshrl.u32 %v621, 7
      %v623 = vsub.s32 %v620, %v622
      %v624 = vrot.slane %v610, %v623
      %v625 = vcombine.high %v617, %v617
      %626 = vrot.lane.b32.xlu0 %v617, 126
      %v627 = vpop.permute.xlu0 %626
      %628 = vrot.lane.b32.xlu0 %v625, 126
      %v629 = vpop.permute.xlu0 %628
      %630 = vrot.lane.b32.xlu0 %v624, 126
      %v631 = vpop.permute.xlu0 %630
      %vm632 = vcmask 1031168
      %v633 = vsel %vm632, %v627, %v629
      %v634 = vsel %vm632, %v629, %v631
      %v636 = vsel %vm423, %v608, 0
      %v639 = vand.u32 %v633, %v430
      %v642 = vand.u32 %v634, %v430
      %644 = vmatprep.subr.bf16.mxu0 %v642
      %645 = vmatpush1.bf16.msra.mxu0 %v639
      %646 = vmatprep.subr.bf16.mxu0 0
      %647 = vmatpush1.bf16.msra.mxu0 0
      %648 = vmatprep.subr.bf16.mxu0 0
      %649 = vmatpush1.bf16.msra.mxu0 0
      %650 = vmatprep.subr.bf16.mxu0 0
      %651 = vmatpush1.bf16.msra.mxu0 0
      %652 = vmatprep.subr.bf16.mxu0 0
      %653 = vmatpush1.bf16.msra.mxu0 0
      %654 = vmatprep.subr.bf16.mxu0 0
      %655 = vmatpush1.bf16.msra.mxu0 0
      %656 = vmatprep.subr.bf16.mxu0 0
      %657 = vmatpush1.bf16.msra.mxu0 0
      %658 = vmatprep.subr.bf16.mxu0 0
      %659 = vmatpush1.bf16.msra.mxu0 0
      %660 = vmatprep.subr.bf16.mxu0 0
      %661 = vmatpush1.bf16.msra.mxu0 0
      %662 = vmatprep.subr.bf16.mxu0 0
      %663 = vmatpush1.bf16.msra.mxu0 0
      %664 = vmatprep.subr.bf16.mxu0 0
      %665 = vmatpush1.bf16.msra.mxu0 0
      %666 = vmatprep.subr.bf16.mxu0 0
      %667 = vmatpush1.bf16.msra.mxu0 0
      %668 = vmatprep.subr.bf16.mxu0 0
      %669 = vmatpush1.bf16.msra.mxu0 0
      %670 = vmatprep.subr.bf16.mxu0 0
      %671 = vmatpush1.bf16.msra.mxu0 0
      %672 = vmatprep.subr.bf16.mxu0 0
      %673 = vmatpush1.bf16.msra.mxu0 0
      %674 = vmatprep.subr.bf16.mxu0 0
      %675 = vmatpush1.bf16.msra.mxu0 0
      %676 = vmatprep.mubr.bf16.mxu0 0
      %677 = vmatmul.mubr.bf16.gmra.mrb[0].mxu0 %v636
      %v678 = vpop.f32.mrb[0].mxu0
      %v679 = vadd.f32 0.0, %v678
      %v680 = vpop.f32.mrb[0].mxu0
      %v681 = vadd.f32 0.0, %v680
      %v682 = vpop.f32.mrb[0].mxu0
      %v683 = vadd.f32 0.0, %v682
      %v684 = vpop.f32.mrb[0].mxu0
      %v685 = vadd.f32 0.0, %v684
      %686 = vdwg.mxu0
      %v687 = vadd.f32 %v538, %v679
      %v688 = vadd.f32 %v540, %v681
      %v689 = vadd.f32 %v542, %v683
      %v690 = vadd.f32 %v544, %v685
      %v691 = vld [vmem:[%s327] sm:$0x3f]
      %692 = vrot.lane.b32.xlu0 %v383, 16
      %v693 = vpop.permute.xlu0 %692
      %v694 = vrot.slane %v693, 6
      %vm695 = vcmask 130048
      %v696 = vsel %vm695, %v694, %v693
      %v698 = vmul.bf16 %v691, %v696
      %s699 = scalar_lea.vmem %s3, 24
      %v700 = vld [vmem:[%s699] sm:$0xf]
      %v701 = vld [vmem:[%s699 + $0x4] sm:$0xf]
      %v704 = vunpack.c.l.b16 %v700
      %v705 = vunpack.c.l.b16 %v701
      %v706 = vpack.c.b16 %v705, %v704
      %v708 = vcombine.high %v698, %v698
      %v710 = vunpack.c.l.s4 1983009808
      %v711 = vunpack.c.0.s8 %v710
      %v712 = vlaneseq
      %v713 = vshrl.u32 %v712, 7
      %v714 = vsub.s32 %v711, %v713
      %v715 = vrot.slane %v698, %v714
      %v717 = vunpack.c.l.s4 1983009808
      %v718 = vunpack.c.0.s8 %v717
      %v719 = vlaneseq
      %v720 = vshrl.u32 %v719, 7
      %v721 = vsub.s32 %v718, %v720
      %v722 = vrot.slane %v708, %v721
      %v723 = vcombine.high %v715, %v715
      %724 = vrot.lane.b32.xlu0 %v715, 112
      %v725 = vpop.permute.xlu0 %724
      %726 = vrot.lane.b32.xlu0 %v723, 112
      %v727 = vpop.permute.xlu0 %726
      %728 = vrot.lane.b32.xlu0 %v722, 112
      %v729 = vpop.permute.xlu0 %728
      %vm730 = vcmask 916480
      %v731 = vsel %vm730, %v725, %v727
      %v732 = vsel %vm730, %v727, %v729
      %v734 = vsel %vm423, %v706, 0
      %v737 = vand.u32 %v731, %v430
      %v740 = vand.u32 %v732, %v430
      %742 = vmatprep.subr.bf16.mxu0 %v740
      %743 = vmatpush1.bf16.msra.mxu0 %v737
      %744 = vmatprep.subr.bf16.mxu0 0
      %745 = vmatpush1.bf16.msra.mxu0 0
      %746 = vmatprep.subr.bf16.mxu0 0
      %747 = vmatpush1.bf16.msra.mxu0 0
      %748 = vmatprep.subr.bf16.mxu0 0
      %749 = vmatpush1.bf16.msra.mxu0 0
      %750 = vmatprep.subr.bf16.mxu0 0
      %751 = vmatpush1.bf16.msra.mxu0 0
      %752 = vmatprep.subr.bf16.mxu0 0
      %753 = vmatpush1.bf16.msra.mxu0 0
      %754 = vmatprep.subr.bf16.mxu0 0
      %755 = vmatpush1.bf16.msra.mxu0 0
      %756 = vmatprep.subr.bf16.mxu0 0
      %757 = vmatpush1.bf16.msra.mxu0 0
      %758 = vmatprep.subr.bf16.mxu0 0
      %759 = vmatpush1.bf16.msra.mxu0 0
      %760 = vmatprep.subr.bf16.mxu0 0
      %761 = vmatpush1.bf16.msra.mxu0 0
      %762 = vmatprep.subr.bf16.mxu0 0
      %763 = vmatpush1.bf16.msra.mxu0 0
      %764 = vmatprep.subr.bf16.mxu0 0
      %765 = vmatpush1.bf16.msra.mxu0 0
      %766 = vmatprep.subr.bf16.mxu0 0
      %767 = vmatpush1.bf16.msra.mxu0 0
      %768 = vmatprep.subr.bf16.mxu0 0
      %769 = vmatpush1.bf16.msra.mxu0 0
      %770 = vmatprep.subr.bf16.mxu0 0
      %771 = vmatpush1.bf16.msra.mxu0 0
      %772 = vmatprep.subr.bf16.mxu0 0
      %773 = vmatpush1.bf16.msra.mxu0 0
      %774 = vmatprep.mubr.bf16.mxu0 0
      %775 = vmatmul.mubr.bf16.gmra.mrb[0].mxu0 %v734
      %v776 = vpop.f32.mrb[0].mxu0
      %v777 = vadd.f32 0.0, %v776
      %v778 = vpop.f32.mrb[0].mxu0
      %v779 = vadd.f32 0.0, %v778
      %v780 = vpop.f32.mrb[0].mxu0
      %v781 = vadd.f32 0.0, %v780
      %v782 = vpop.f32.mrb[0].mxu0
      %v783 = vadd.f32 0.0, %v782
      %784 = vdwg.mxu0
      %v785 = vadd.f32 %v687, %v777
      %v786 = vadd.f32 %v688, %v779
      %v787 = vadd.f32 %v689, %v781
      %v788 = vadd.f32 %v690, %v783
      %v789 = vld [vmem:[%s327] sm:$0x3f]
      %s790 = scalar_lea.vmem %s3, 32
      %v791 = vld [vmem:[%s790] sm:$0xf]
      %v792 = vld [vmem:[%s790 + $0x4] sm:$0xf]
      %v795 = vunpack.c.l.b16 %v791
      %v796 = vunpack.c.l.b16 %v792
      %v797 = vpack.c.b16 %v796, %v795
      %v799 = vcombine.high %v789, %v789
      %v801 = vunpack.c.l.s4 1983009808
      %v802 = vunpack.c.0.s8 %v801
      %v803 = vlaneseq
      %v804 = vshrl.u32 %v803, 7
      %v805 = vsub.s32 %v802, %v804
      %v806 = vrot.slane %v789, %v805
      %v808 = vunpack.c.l.s4 1983009808
      %v809 = vunpack.c.0.s8 %v808
      %v810 = vlaneseq
      %v811 = vshrl.u32 %v810, 7
      %v812 = vsub.s32 %v809, %v811
      %v813 = vrot.slane %v799, %v812
      %v814 = vcombine.high %v806, %v806
      %815 = vrot.lane.b32.xlu0 %v806, 111
      %v816 = vpop.permute.xlu0 %815
      %817 = vrot.lane.b32.xlu0 %v814, 111
      %v818 = vpop.permute.xlu0 %817
      %819 = vrot.lane.b32.xlu0 %v813, 111
      %v820 = vpop.permute.xlu0 %819
      %vm821 = vcmask 908288
      %v822 = vsel %vm821, %v816, %v818
      %v823 = vsel %vm821, %v818, %v820
      %v825 = vsel %vm423, %v797, 0
      %v828 = vand.u32 %v822, %v430
      %v831 = vand.u32 %v823, %v430
      %833 = vmatprep.subr.bf16.mxu0 %v831
      %834 = vmatpush1.bf16.msra.mxu0 %v828
      %835 = vmatprep.subr.bf16.mxu0 0
      %836 = vmatpush1.bf16.msra.mxu0 0
      %837 = vmatprep.subr.bf16.mxu0 0
      %838 = vmatpush1.bf16.msra.mxu0 0
      %839 = vmatprep.subr.bf16.mxu0 0
      %840 = vmatpush1.bf16.msra.mxu0 0
      %841 = vmatprep.subr.bf16.mxu0 0
      %842 = vmatpush1.bf16.msra.mxu0 0
      %843 = vmatprep.subr.bf16.mxu0 0
      %844 = vmatpush1.bf16.msra.mxu0 0
      %845 = vmatprep.subr.bf16.mxu0 0
      %846 = vmatpush1.bf16.msra.mxu0 0
      %847 = vmatprep.subr.bf16.mxu0 0
      %848 = vmatpush1.bf16.msra.mxu0 0
      %849 = vmatprep.subr.bf16.mxu0 0
      %850 = vmatpush1.bf16.msra.mxu0 0
      %851 = vmatprep.subr.bf16.mxu0 0
      %852 = vmatpush1.bf16.msra.mxu0 0
      %853 = vmatprep.subr.bf16.mxu0 0
      %854 = vmatpush1.bf16.msra.mxu0 0
      %855 = vmatprep.subr.bf16.mxu0 0
      %856 = vmatpush1.bf16.msra.mxu0 0
      %857 = vmatprep.subr.bf16.mxu0 0
      %858 = vmatpush1.bf16.msra.mxu0 0
      %859 = vmatprep.subr.bf16.mxu0 0
      %860 = vmatpush1.bf16.msra.mxu0 0
      %861 = vmatprep.subr.bf16.mxu0 0
      %862 = vmatpush1.bf16.msra.mxu0 0
      %863 = vmatprep.subr.bf16.mxu0 0
      %864 = vmatpush1.bf16.msra.mxu0 0
      %865 = vmatprep.mubr.bf16.mxu0 0
      %866 = vmatmul.mubr.bf16.gmra.mrb[0].mxu0 %v825
      %v867 = vpop.f32.mrb[0].mxu0
      %v868 = vadd.f32 0.0, %v867
      %v869 = vpop.f32.mrb[0].mxu0
      %v870 = vadd.f32 0.0, %v869
      %v871 = vpop.f32.mrb[0].mxu0
      %v872 = vadd.f32 0.0, %v871
      %v873 = vpop.f32.mrb[0].mxu0
      %v874 = vadd.f32 0.0, %v873
      %875 = vdwg.mxu0
      %v876 = vadd.f32 %v785, %v868
      %v877 = vadd.f32 %v786, %v870
      %v878 = vadd.f32 %v787, %v872
      %v879 = vadd.f32 %v788, %v874
      %v880 = vld [vmem:[%s327] sm:$0x3f]
      %881 = vrot.lane.b32.xlu0 %v593, 18
      %v882 = vpop.permute.xlu0 %881
      %v883 = vrot.slane %v882, 6
      %vm884 = vcmask 146432
      %v885 = vsel %vm884, %v883, %v882
      %v887 = vmul.bf16 %v880, %v885
      %s888 = scalar_lea.vmem %s3, 40
      %v889 = vld [vmem:[%s888] sm:$0xf]
      %v890 = vld [vmem:[%s888 + $0x4] sm:$0xf]
      %v893 = vunpack.c.l.b16 %v889
      %v894 = vunpack.c.l.b16 %v890
      %v895 = vpack.c.b16 %v894, %v893
      %v897 = vcombine.high %v887, %v887
      %v899 = vunpack.c.l.s4 1983009808
      %v900 = vunpack.c.0.s8 %v899
      %v901 = vlaneseq
      %v902 = vshrl.u32 %v901, 7
      %v903 = vsub.s32 %v900, %v902
      %v904 = vrot.slane %v887, %v903
      %v906 = vunpack.c.l.s4 1983009808
      %v907 = vunpack.c.0.s8 %v906
      %v908 = vlaneseq
      %v909 = vshrl.u32 %v908, 7
      %v910 = vsub.s32 %v907, %v909
      %v911 = vrot.slane %v897, %v910
      %v912 = vcombine.high %v904, %v904
      %913 = vrot.lane.b32.xlu0 %v904, 110
      %v914 = vpop.permute.xlu0 %913
      %915 = vrot.lane.b32.xlu0 %v912, 110
      %v916 = vpop.permute.xlu0 %915
      %917 = vrot.lane.b32.xlu0 %v911, 110
      %v918 = vpop.permute.xlu0 %917
      %vm919 = vcmask 900096
      %v920 = vsel %vm919, %v914, %v916
      %v921 = vsel %vm919, %v916, %v918
      %v923 = vsel %vm423, %v895, 0
      %v926 = vand.u32 %v920, %v430
      %v929 = vand.u32 %v921, %v430
      %931 = vmatprep.subr.bf16.mxu0 %v929
      %932 = vmatpush1.bf16.msra.mxu0 %v926
      %933 = vmatprep.subr.bf16.mxu0 0
      %934 = vmatpush1.bf16.msra.mxu0 0
      %935 = vmatprep.subr.bf16.mxu0 0
      %936 = vmatpush1.bf16.msra.mxu0 0
      %937 = vmatprep.subr.bf16.mxu0 0
      %938 = vmatpush1.bf16.msra.mxu0 0
      %939 = vmatprep.subr.bf16.mxu0 0
      %940 = vmatpush1.bf16.msra.mxu0 0
      %941 = vmatprep.subr.bf16.mxu0 0
      %942 = vmatpush1.bf16.msra.mxu0 0
      %943 = vmatprep.subr.bf16.mxu0 0
      %944 = vmatpush1.bf16.msra.mxu0 0
      %945 = vmatprep.subr.bf16.mxu0 0
      %946 = vmatpush1.bf16.msra.mxu0 0
      %947 = vmatprep.subr.bf16.mxu0 0
      %948 = vmatpush1.bf16.msra.mxu0 0
      %949 = vmatprep.subr.bf16.mxu0 0
      %950 = vmatpush1.bf16.msra.mxu0 0
      %951 = vmatprep.subr.bf16.mxu0 0
      %952 = vmatpush1.bf16.msra.mxu0 0
      %953 = vmatprep.subr.bf16.mxu0 0
      %954 = vmatpush1.bf16.msra.mxu0 0
      %955 = vmatprep.subr.bf16.mxu0 0
      %956 = vmatpush1.bf16.msra.mxu0 0
      %957 = vmatprep.subr.bf16.mxu0 0
      %958 = vmatpush1.bf16.msra.mxu0 0
      %959 = vmatprep.subr.bf16.mxu0 0
      %960 = vmatpush1.bf16.msra.mxu0 0
      %961 = vmatprep.subr.bf16.mxu0 0
      %962 = vmatpush1.bf16.msra.mxu0 0
      %963 = vmatprep.mubr.bf16.mxu0 0
      %964 = vmatmul.mubr.bf16.gmra.mrb[0].mxu0 %v923
      %v965 = vpop.f32.mrb[0].mxu0
      %v966 = vadd.f32 0.0, %v965
      %v967 = vpop.f32.mrb[0].mxu0
      %v968 = vadd.f32 0.0, %v967
      %v969 = vpop.f32.mrb[0].mxu0
      %v970 = vadd.f32 0.0, %v969
      %v971 = vpop.f32.mrb[0].mxu0
      %v972 = vadd.f32 0.0, %v971
      %973 = vdwg.mxu0
      %v974 = vadd.f32 %v876, %v966
      %v975 = vadd.f32 %v877, %v968
      %v976 = vadd.f32 %v878, %v970
      %v977 = vadd.f32 %v879, %v972
      %v978 = vld [vmem:[%s327] sm:$0x3f]
      %979 = vrot.lane.b32.xlu0 %v383, 32
      %v980 = vpop.permute.xlu0 %979
      %v981 = vrot.slane %v980, 6
      %vm982 = vcmask 261120
      %v983 = vsel %vm982, %v981, %v980
      %v985 = vmul.bf16 %v978, %v983
      %s986 = scalar_lea.vmem %s3, 48
      %v987 = vld [vmem:[%s986] sm:$0xf]
      %v988 = vld [vmem:[%s986 + $0x4] sm:$0xf]
      %v991 = vunpack.c.l.b16 %v987
      %v992 = vunpack.c.l.b16 %v988
      %v993 = vpack.c.b16 %v992, %v991
      %v995 = vcombine.high %v985, %v985
      %v997 = vunpack.c.l.s4 1983009808
      %v998 = vunpack.c.0.s8 %v997
      %v999 = vlaneseq
      %v1000 = vshrl.u32 %v999, 7
      %v1001 = vsub.s32 %v998, %v1000
      %v1002 = vrot.slane %v985, %v1001
      %v1004 = vunpack.c.l.s4 1983009808
      %v1005 = vunpack.c.0.s8 %v1004
      %v1006 = vlaneseq
      %v1007 = vshrl.u32 %v1006, 7
      %v1008 = vsub.s32 %v1005, %v1007
      %v1009 = vrot.slane %v995, %v1008
      %v1010 = vcombine.high %v1002, %v1002
      %1011 = vrot.lane.b32.xlu0 %v1002, 96
      %v1012 = vpop.permute.xlu0 %1011
      %1013 = vrot.lane.b32.xlu0 %v1010, 96
      %v1014 = vpop.permute.xlu0 %1013
      %1015 = vrot.lane.b32.xlu0 %v1009, 96
      %v1016 = vpop.permute.xlu0 %1015
      %vm1017 = vcmask 785408
      %v1018 = vsel %vm1017, %v1012, %v1014
      %v1019 = vsel %vm1017, %v1014, %v1016
      %v1021 = vsel %vm423, %v993, 0
      %v1024 = vand.u32 %v1018, %v430
      %v1027 = vand.u32 %v1019, %v430
      %1029 = vmatprep.subr.bf16.mxu0 %v1027
      %1030 = vmatpush1.bf16.msra.mxu0 %v1024
      %1031 = vmatprep.subr.bf16.mxu0 0
      %1032 = vmatpush1.bf16.msra.mxu0 0
      %1033 = vmatprep.subr.bf16.mxu0 0
      %1034 = vmatpush1.bf16.msra.mxu0 0
      %1035 = vmatprep.subr.bf16.mxu0 0
      %1036 = vmatpush1.bf16.msra.mxu0 0
      %1037 = vmatprep.subr.bf16.mxu0 0
      %1038 = vmatpush1.bf16.msra.mxu0 0
      %1039 = vmatprep.subr.bf16.mxu0 0
      %1040 = vmatpush1.bf16.msra.mxu0 0
      %1041 = vmatprep.subr.bf16.mxu0 0
      %1042 = vmatpush1.bf16.msra.mxu0 0
      %1043 = vmatprep.subr.bf16.mxu0 0
      %1044 = vmatpush1.bf16.msra.mxu0 0
      %1045 = vmatprep.subr.bf16.mxu0 0
      %1046 = vmatpush1.bf16.msra.mxu0 0
      %1047 = vmatprep.subr.bf16.mxu0 0
      %1048 = vmatpush1.bf16.msra.mxu0 0
      %1049 = vmatprep.subr.bf16.mxu0 0
      %1050 = vmatpush1.bf16.msra.mxu0 0
      %1051 = vmatprep.subr.bf16.mxu0 0
      %1052 = vmatpush1.bf16.msra.mxu0 0
      %1053 = vmatprep.subr.bf16.mxu0 0
      %1054 = vmatpush1.bf16.msra.mxu0 0
      %1055 = vmatprep.subr.bf16.mxu0 0
      %1056 = vmatpush1.bf16.msra.mxu0 0
      %1057 = vmatprep.subr.bf16.mxu0 0
      %1058 = vmatpush1.bf16.msra.mxu0 0
      %1059 = vmatprep.subr.bf16.mxu0 0
      %1060 = vmatpush1.bf16.msra.mxu0 0
      %1061 = vmatprep.mubr.bf16.mxu0 0
      %1062 = vmatmul.mubr.bf16.gmra.mrb[0].mxu0 %v1021
      %v1063 = vpop.f32.mrb[0].mxu0
      %v1064 = vadd.f32 0.0, %v1063
      %v1065 = vpop.f32.mrb[0].mxu0
      %v1066 = vadd.f32 0.0, %v1065
      %v1067 = vpop.f32.mrb[0].mxu0
      %v1068 = vadd.f32 0.0, %v1067
      %v1069 = vpop.f32.mrb[0].mxu0
      %v1070 = vadd.f32 0.0, %v1069
      %1071 = vdwg.mxu0
      %v1072 = vadd.f32 %v974, %v1064
      %v1073 = vadd.f32 %v975, %v1066
      %v1074 = vadd.f32 %v976, %v1068
      %v1075 = vadd.f32 %v977, %v1070
      %v1076 = vld [vmem:[%s327] sm:$0x3f]
      %s1077 = scalar_lea.vmem %s3, 56
      %v1078 = vld [vmem:[%s1077] sm:$0xf]
      %v1079 = vld [vmem:[%s1077 + $0x4] sm:$0xf]
      %v1082 = vunpack.c.l.b16 %v1078
      %v1083 = vunpack.c.l.b16 %v1079
      %v1084 = vpack.c.b16 %v1083, %v1082
      %v1086 = vcombine.high %v1076, %v1076
      %v1088 = vunpack.c.l.s4 1983009808
      %v1089 = vunpack.c.0.s8 %v1088
      %v1090 = vlaneseq
      %v1091 = vshrl.u32 %v1090, 7
      %v1092 = vsub.s32 %v1089, %v1091
      %v1093 = vrot.slane %v1076, %v1092
      %v1095 = vunpack.c.l.s4 1983009808
      %v1096 = vunpack.c.0.s8 %v1095
      %v1097 = vlaneseq
      %v1098 = vshrl.u32 %v1097, 7
      %v1099 = vsub.s32 %v1096, %v1098
      %v1100 = vrot.slane %v1086, %v1099
      %v1101 = vcombine.high %v1093, %v1093
      %1102 = vrot.lane.b32.xlu0 %v1093, 95
      %v1103 = vpop.permute.xlu0 %1102
      %1104 = vrot.lane.b32.xlu0 %v1101, 95
      %v1105 = vpop.permute.xlu0 %1104
      %1106 = vrot.lane.b32.xlu0 %v1100, 95
      %v1107 = vpop.permute.xlu0 %1106
      %vm1108 = vcmask 777216
      %v1109 = vsel %vm1108, %v1103, %v1105
      %v1110 = vsel %vm1108, %v1105, %v1107
      %v1112 = vsel %vm423, %v1084, 0
      %v1115 = vand.u32 %v1109, %v430
      %v1118 = vand.u32 %v1110, %v430
      %1120 = vmatprep.subr.bf16.mxu0 %v1118
      %1121 = vmatpush1.bf16.msra.mxu0 %v1115
      %1122 = vmatprep.subr.bf16.mxu0 0
      %1123 = vmatpush1.bf16.msra.mxu0 0
      %1124 = vmatprep.subr.bf16.mxu0 0
      %1125 = vmatpush1.bf16.msra.mxu0 0
      %1126 = vmatprep.subr.bf16.mxu0 0
      %1127 = vmatpush1.bf16.msra.mxu0 0
      %1128 = vmatprep.subr.bf16.mxu0 0
      %1129 = vmatpush1.bf16.msra.mxu0 0
      %1130 = vmatprep.subr.bf16.mxu0 0
      %1131 = vmatpush1.bf16.msra.mxu0 0
      %1132 = vmatprep.subr.bf16.mxu0 0
      %1133 = vmatpush1.bf16.msra.mxu0 0
      %1134 = vmatprep.subr.bf16.mxu0 0
      %1135 = vmatpush1.bf16.msra.mxu0 0
      %1136 = vmatprep.subr.bf16.mxu0 0
      %1137 = vmatpush1.bf16.msra.mxu0 0
      %1138 = vmatprep.subr.bf16.mxu0 0
      %1139 = vmatpush1.bf16.msra.mxu0 0
      %1140 = vmatprep.subr.bf16.mxu0 0
      %1141 = vmatpush1.bf16.msra.mxu0 0
      %1142 = vmatprep.subr.bf16.mxu0 0
      %1143 = vmatpush1.bf16.msra.mxu0 0
      %1144 = vmatprep.subr.bf16.mxu0 0
      %1145 = vmatpush1.bf16.msra.mxu0 0
      %1146 = vmatprep.subr.bf16.mxu0 0
      %1147 = vmatpush1.bf16.msra.mxu0 0
      %1148 = vmatprep.subr.bf16.mxu0 0
      %1149 = vmatpush1.bf16.msra.mxu0 0
      %1150 = vmatprep.subr.bf16.mxu0 0
      %1151 = vmatpush1.bf16.msra.mxu0 0
      %1152 = vmatprep.mubr.bf16.mxu0 0
      %1153 = vmatmul.mubr.bf16.gmra.mrb[0].mxu0 %v1112
      %v1154 = vpop.f32.mrb[0].mxu0
      %v1155 = vadd.f32 0.0, %v1154
      %v1156 = vpop.f32.mrb[0].mxu0
      %v1157 = vadd.f32 0.0, %v1156
      %v1158 = vpop.f32.mrb[0].mxu0
      %v1159 = vadd.f32 0.0, %v1158
      %v1160 = vpop.f32.mrb[0].mxu0
      %v1161 = vadd.f32 0.0, %v1160
      %1162 = vdwg.mxu0
      %v1163 = vadd.f32 %v1072, %v1155
      %v1164 = vadd.f32 %v1073, %v1157
      %v1165 = vadd.f32 %v1074, %v1159
      %v1166 = vadd.f32 %v1075, %v1161
      %v1167 = vld [vmem:[%s327] sm:$0x3f]
      %1168 = vrot.lane.b32.xlu0 %v593, 34
      %v1169 = vpop.permute.xlu0 %1168
      %v1170 = vrot.slane %v1169, 6
      %vm1171 = vcmask 277504
      %v1172 = vsel %vm1171, %v1170, %v1169
      %v1174 = vmul.bf16 %v1167, %v1172
      %s1175 = scalar_lea.vmem %s3, 64
      %v1176 = vld [vmem:[%s1175] sm:$0xf]
      %v1177 = vld [vmem:[%s1175 + $0x4] sm:$0xf]
      %v1180 = vunpack.c.l.b16 %v1176
      %v1181 = vunpack.c.l.b16 %v1177
      %v1182 = vpack.c.b16 %v1181, %v1180
      %v1184 = vcombine.high %v1174, %v1174
      %v1186 = vunpack.c.l.s4 1983009808
      %v1187 = vunpack.c.0.s8 %v1186
      %v1188 = vlaneseq
      %v1189 = vshrl.u32 %v1188, 7
      %v1190 = vsub.s32 %v1187, %v1189
      %v1191 = vrot.slane %v1174, %v1190
      %v1193 = vunpack.c.l.s4 1983009808
      %v1194 = vunpack.c.0.s8 %v1193
      %v1195 = vlaneseq
      %v1196 = vshrl.u32 %v1195, 7
      %v1197 = vsub.s32 %v1194, %v1196
      %v1198 = vrot.slane %v1184, %v1197
      %v1199 = vcombine.high %v1191, %v1191
      %1200 = vrot.lane.b32.xlu0 %v1191, 94
      %v1201 = vpop.permute.xlu0 %1200
      %1202 = vrot.lane.b32.xlu0 %v1199, 94
      %v1203 = vpop.permute.xlu0 %1202
      %1204 = vrot.lane.b32.xlu0 %v1198, 94
      %v1205 = vpop.permute.xlu0 %1204
      %vm1206 = vcmask 769024
      %v1207 = vsel %vm1206, %v1201, %v1203
      %v1208 = vsel %vm1206, %v1203, %v1205
      %v1210 = vsel %vm423, %v1182, 0
      %v1213 = vand.u32 %v1207, %v430
      %v1216 = vand.u32 %v1208, %v430
      %1218 = vmatprep.subr.bf16.mxu0 %v1216
      %1219 = vmatpush1.bf16.msra.mxu0 %v1213
      %1220 = vmatprep.subr.bf16.mxu0 0
      %1221 = vmatpush1.bf16.msra.mxu0 0
      %1222 = vmatprep.subr.bf16.mxu0 0
      %1223 = vmatpush1.bf16.msra.mxu0 0
      %1224 = vmatprep.subr.bf16.mxu0 0
      %1225 = vmatpush1.bf16.msra.mxu0 0
      %1226 = vmatprep.subr.bf16.mxu0 0
      %1227 = vmatpush1.bf16.msra.mxu0 0
      %1228 = vmatprep.subr.bf16.mxu0 0
      %1229 = vmatpush1.bf16.msra.mxu0 0
      %1230 = vmatprep.subr.bf16.mxu0 0
      %1231 = vmatpush1.bf16.msra.mxu0 0
      %1232 = vmatprep.subr.bf16.mxu0 0
      %1233 = vmatpush1.bf16.msra.mxu0 0
      %1234 = vmatprep.subr.bf16.mxu0 0
      %1235 = vmatpush1.bf16.msra.mxu0 0
      %1236 = vmatprep.subr.bf16.mxu0 0
      %1237 = vmatpush1.bf16.msra.mxu0 0
      %1238 = vmatprep.subr.bf16.mxu0 0
      %1239 = vmatpush1.bf16.msra.mxu0 0
      %1240 = vmatprep.subr.bf16.mxu0 0
      %1241 = vmatpush1.bf16.msra.mxu0 0
      %1242 = vmatprep.subr.bf16.mxu0 0
      %1243 = vmatpush1.bf16.msra.mxu0 0
      %1244 = vmatprep.subr.bf16.mxu0 0
      %1245 = vmatpush1.bf16.msra.mxu0 0
      %1246 = vmatprep.subr.bf16.mxu0 0
      %1247 = vmatpush1.bf16.msra.mxu0 0
      %1248 = vmatprep.subr.bf16.mxu0 0
      %1249 = vmatpush1.bf16.msra.mxu0 0
      %1250 = vmatprep.mubr.bf16.mxu0 0
      %1251 = vmatmul.mubr.bf16.gmra.mrb[0].mxu0 %v1210
      %v1252 = vpop.f32.mrb[0].mxu0
      %v1253 = vadd.f32 0.0, %v1252
      %v1254 = vpop.f32.mrb[0].mxu0
      %v1255 = vadd.f32 0.0, %v1254
      %v1256 = vpop.f32.mrb[0].mxu0
      %v1257 = vadd.f32 0.0, %v1256
      %v1258 = vpop.f32.mrb[0].mxu0
      %v1259 = vadd.f32 0.0, %v1258
      %1260 = vdwg.mxu0
      %v1261 = vadd.f32 %v1163, %v1253
      %v1262 = vadd.f32 %v1164, %v1255
      %v1263 = vadd.f32 %v1165, %v1257
      %v1264 = vadd.f32 %v1166, %v1259
      %v1265 = vld [vmem:[%s4] sm:$0xff]
      %v1266 = vld [vmem:[%s4 + $0x8] sm:$0xff]
      %1268 = vset.pattern.permute.xlu0 0
      %1269 = vperm.xlu0 %1268, %v1265
      %v1270 = vpop.permute.xlu0 %1269
      %1273 = vset.pattern.permute.xlu0 0
      %1274 = vperm.xlu0 %1273, %v1266
      %v1275 = vpop.permute.xlu0 %1274
      %v1277 = vadd.f32 %v1261, %v1270
      %v1278 = vadd.f32 %v1262, %v1270
      %v1279 = vadd.f32 %v1263, %v1275
      %v1280 = vadd.f32 %v1264, %v1275
      %v1281 = vmax.f32 %v1277, 0.0
      %v1282 = vmax.f32 %v1278, 0.0
      %v1283 = vmax.f32 %v1279, 0.0
      %v1284 = vmax.f32 %v1280, 0.0
      %v1285 = vld [vmem:[%s5] sm:$0xf]
      %v1286 = vld [vmem:[%s5 + $0x4] sm:$0xf]
      %v1287 = vld [vmem:[%s5 + $0x8] sm:$0xf]
      %v1288 = vld [vmem:[%s5 + $0xc] sm:$0xf]
      %v1289 = vpack.c.bf16 %v1283, %v1281
      %v1290 = vpack.c.bf16 %v1284, %v1282
      %v1291 = vld [vmem:[%s6] sm:$0xff]
      %v1292 = vld [vmem:[%s6 + $0x8] sm:$0xff]
      %v1293 = vld [vmem:[%s6 + $0x10] sm:$0xff]
      %v1294 = vld [vmem:[%s6 + $0x18] sm:$0xff]
      %1296 = vset.pattern.permute.xlu0 0
      %1297 = vperm.xlu0 %1296, %v1291
      %v1298 = vpop.permute.xlu0 %1297
      %1301 = vset.pattern.permute.xlu0 0
      %1302 = vperm.xlu0 %1301, %v1292
      %v1303 = vpop.permute.xlu0 %1302
      %1306 = vset.pattern.permute.xlu0 0
      %1307 = vperm.xlu0 %1306, %v1293
      %v1308 = vpop.permute.xlu0 %1307
      %1311 = vset.pattern.permute.xlu0 0
      %1312 = vperm.xlu0 %1311, %v1294
      %v1313 = vpop.permute.xlu0 %1312
      %v1319 = vunpack.c.l.b16 %v1285
      %v1320 = vunpack.c.l.b16 %v1286
      %v1321 = vunpack.c.l.b16 %v1287
      %v1322 = vunpack.c.l.b16 %v1288
      %v1323 = vpack.c.b16 %v1320, %v1319
      %v1324 = vpack.c.b16 %v1322, %v1321
      %vm1325 = vcmask 130048
      %v1327 = vsel %vm1325, %v1323, 0
      %v1330 = vsel %vm1325, %v1324, 0
      %1332 = vmatprep.subr.bf16.mxu0 %v1290
      %1333 = vmatpush1.bf16.msra.mxu0 %v1289
      %1334 = vmatprep.subr.bf16.mxu0 0
      %1335 = vmatpush1.bf16.msra.mxu0 0
      %1336 = vmatprep.subr.bf16.mxu0 0
      %1337 = vmatpush1.bf16.msra.mxu0 0
      %1338 = vmatprep.subr.bf16.mxu0 0
      %1339 = vmatpush1.bf16.msra.mxu0 0
      %1340 = vmatprep.subr.bf16.mxu0 0
      %1341 = vmatpush1.bf16.msra.mxu0 0
      %1342 = vmatprep.subr.bf16.mxu0 0
      %1343 = vmatpush1.bf16.msra.mxu0 0
      %1344 = vmatprep.subr.bf16.mxu0 0
      %1345 = vmatpush1.bf16.msra.mxu0 0
      %1346 = vmatprep.subr.bf16.mxu0 0
      %1347 = vmatpush1.bf16.msra.mxu0 0
      %1348 = vmatprep.subr.bf16.mxu0 0
      %1349 = vmatpush1.bf16.msra.mxu0 0
      %1350 = vmatprep.subr.bf16.mxu0 0
      %1351 = vmatpush1.bf16.msra.mxu0 0
      %1352 = vmatprep.subr.bf16.mxu0 0
      %1353 = vmatpush1.bf16.msra.mxu0 0
      %1354 = vmatprep.subr.bf16.mxu0 0
      %1355 = vmatpush1.bf16.msra.mxu0 0
      %1356 = vmatprep.subr.bf16.mxu0 0
      %1357 = vmatpush1.bf16.msra.mxu0 0
      %1358 = vmatprep.subr.bf16.mxu0 0
      %1359 = vmatpush1.bf16.msra.mxu0 0
      %1360 = vmatprep.subr.bf16.mxu0 0
      %1361 = vmatpush1.bf16.msra.mxu0 0
      %1362 = vmatprep.subr.bf16.mxu0 0
      %1363 = vmatpush1.bf16.msra.mxu0 0
      %1364 = vmatprep.mubr.bf16.mxu0 0
      %1365 = vmatmul.mubr.bf16.gmra.mrb[0].mxu0 %v1327
      %v1366 = vpop.f32.mrb[0].mxu0
      %v1367 = vadd.f32 %v1298, %v1366
      %v1368 = vpop.f32.mrb[0].mxu0
      %v1369 = vadd.f32 %v1298, %v1368
      %v1370 = vpop.f32.mrb[0].mxu0
      %v1371 = vadd.f32 %v1303, %v1370
      %v1372 = vpop.f32.mrb[0].mxu0
      %v1373 = vadd.f32 %v1303, %v1372
      %1374 = vmatprep.mubr.bf16.mxu0 0
      %1375 = vmatmul.mubr.bf16.gmra.mrb[0].mxu0 %v1330
      %v1376 = vpop.f32.mrb[0].mxu0
      %v1377 = vadd.f32 %v1308, %v1376
      %v1378 = vpop.f32.mrb[0].mxu0
      %v1379 = vadd.f32 %v1308, %v1378
      %v1380 = vpop.f32.mrb[0].mxu0
      %v1381 = vadd.f32 %v1313, %v1380
      %v1382 = vpop.f32.mrb[0].mxu0
      %v1383 = vadd.f32 %v1313, %v1382
      %1384 = vdwg.mxu0
      %v1385 = vmax.f32 %v1367, 0.0
      %v1386 = vmax.f32 %v1369, 0.0
      %v1387 = vmax.f32 %v1371, 0.0
      %v1388 = vmax.f32 %v1373, 0.0
      %v1389 = vmax.f32 %v1377, 0.0
      %v1390 = vmax.f32 %v1379, 0.0
      %v1391 = vmax.f32 %v1381, 0.0
      %v1392 = vmax.f32 %v1383, 0.0
      %v1393 = vld [vmem:[%s7] sm:$0xf]
      %v1394 = vpack.c.bf16 %v1387, %v1385
      %v1395 = vpack.c.bf16 %v1388, %v1386
      %v1396 = vpack.c.bf16 %v1391, %v1389
      %v1397 = vpack.c.bf16 %v1392, %v1390
      %v1398 = vld [vmem:[%s8] sm:$0xff]
      %1400 = vset.pattern.permute.xlu0 0
      %1401 = vperm.xlu0 %1400, %v1398
      %v1402 = vpop.permute.xlu0 %1401
      %vm1404 = vcmask 261120
      %v1406 = vsel %vm1404, %v1393, 0
      %1408 = vmatprep.subr.bf16.mxu0 %v1395
      %1409 = vmatpush1.bf16.msra.mxu0 %v1394
      %1410 = vmatprep.subr.bf16.mxu0 %v1397
      %1411 = vmatpush1.bf16.msra.mxu0 %v1396
      %1412 = vmatprep.subr.bf16.mxu0 0
      %1413 = vmatpush1.bf16.msra.mxu0 0
      %1414 = vmatprep.subr.bf16.mxu0 0
      %1415 = vmatpush1.bf16.msra.mxu0 0
      %1416 = vmatprep.subr.bf16.mxu0 0
      %1417 = vmatpush1.bf16.msra.mxu0 0
      %1418 = vmatprep.subr.bf16.mxu0 0
      %1419 = vmatpush1.bf16.msra.mxu0 0
      %1420 = vmatprep.subr.bf16.mxu0 0
      %1421 = vmatpush1.bf16.msra.mxu0 0
      %1422 = vmatprep.subr.bf16.mxu0 0
      %1423 = vmatpush1.bf16.msra.mxu0 0
      %1424 = vmatprep.subr.bf16.mxu0 0
      %1425 = vmatpush1.bf16.msra.mxu0 0
      %1426 = vmatprep.subr.bf16.mxu0 0
      %1427 = vmatpush1.bf16.msra.mxu0 0
      %1428 = vmatprep.subr.bf16.mxu0 0
      %1429 = vmatpush1.bf16.msra.mxu0 0
      %1430 = vmatprep.subr.bf16.mxu0 0
      %1431 = vmatpush1.bf16.msra.mxu0 0
      %1432 = vmatprep.subr.bf16.mxu0 0
      %1433 = vmatpush1.bf16.msra.mxu0 0
      %1434 = vmatprep.subr.bf16.mxu0 0
      %1435 = vmatpush1.bf16.msra.mxu0 0
      %1436 = vmatprep.subr.bf16.mxu0 0
      %1437 = vmatpush1.bf16.msra.mxu0 0
      %1438 = vmatprep.subr.bf16.mxu0 0
      %1439 = vmatpush1.bf16.msra.mxu0 0
      %1440 = vmatprep.mubr.bf16.mxu0 0
      %1441 = vmatmul.mubr.bf16.gmra.mrb[0].mxu0 %v1406
      %v1442 = vpop.f32.mrb[0].mxu0
      %v1443 = vadd.f32 %v1402, %v1442
      %v1444 = vpop.f32.mrb[0].mxu0
      %v1445 = vadd.f32 %v1402, %v1444
      %v1446 = vpop.f32.mrb[0].mxu0
      %v1447 = vpop.f32.mrb[0].mxu0
      %1448 = vdwg.mxu0
      %1449 = vst [vmem:[%s332] sm:$0xff] %v1443
      %1450 = vst [vmem:[%s332 + $0x8] sm:$0xff] %v1445
      %p1451 = scmp.lt.s32.totalorder %s20, 1
      %s1452 = scalar_select %p1451, %s20, 1
      %s1453 = smul.addr %s1452, 2
      %s1454 = smul.addr %s1453, 8
      %s1455 = scalar_lea.vmem %s9, %s1454
      // Predicated region
      $region57: #{top_down_forward.1} parent=55 // pred_check
        %p1456 = pneg %p232
      $region58: #{top_down_forward.1} parent=55 // pred_check_branch
        %1458 = sbr.rel (%p1456) target = $region60
      $region59: #{top_down_forward.1} parent=55 // pred_region
        _
      $region60: #{top_down_forward.1} parent=55 // pred_fallthru
        _
    $region56: #{top_down_forward.1} parent=5 // pred_fallthru
      _
    %p1459 = scmp.le.s32.totalorder 2, %s15
    // Predicated region
    $region61: #{top_down_forward.1} parent=5 // pred_check
      %p1460 = pneg %p1459
    $region62: #{top_down_forward.1} parent=5 // pred_check_branch
      %1462 = sbr.rel (%p1460) target = $region64
    $region63: #{top_down_forward.1} parent=5 // pred_region
      %s1463 = ssub.s32 %s15, 2
      // Predicated region
      $region65: #{top_down_forward.1} parent=63 // pred_check
        %p1464 = pneg %p238
      $region66: #{top_down_forward.1} parent=63 // pred_check_branch
        %1466 = sbr.rel (%p1464) target = $region68
      $region67: #{top_down_forward.1} parent=63 // pred_region
        %p1467 = scmp.lt.s32.totalorder %s21, 1
        %s1468 = scalar_select %p1467, %s21, 1
        %s1469 = smul.addr %s1468, 2
        %s1470 = smul.addr %s1469, 8
        %s1471 = scalar_lea.vmem %s9, %s1470
      $region68: #{top_down_forward.1} parent=63 // pred_fallthru
        _
    $region64: #{top_down_forward.1} parent=5 // pred_fallthru
      _
  $region6: #{top_down_forward.1} parent=0 // loop_footer
    %s19 = sadd.s32 1, %s15
  $region7: #{top_down_forward.1} parent=0 // loop_footer_branch
    %14 = sbr.rel target = $region3
  $region8: #{top_down_forward.1} parent=0 // loop_exit
    _

</llo_original>
